<compile_context>
chip_gen: v6e
topology: v6e:2x2x1
jax: 0.10.0
libtpu: 0.0.40
codegen_flags: <defaults>
</compile_context>

<pallas_src>
import math
from functools import partial

import jax
import jax.numpy as jnp
from jax.experimental import pallas as pl
from jax.experimental.pallas import tpu as pltpu


# ----------------------------------------------------------------------------
# Small-model config (synthetic stand-in for PubMedBERT-base)
# ----------------------------------------------------------------------------
VOCAB = 100
MAX_POS = 16
TYPE_VOCAB = 2
HIDDEN = 32
NUM_HEADS = 2
HEAD_DIM = HIDDEN // NUM_HEADS
INTERMEDIATE = 64
NUM_LAYERS = 2
NUM_LABELS = 6
NUM_KEYWORDS = 10
KW_HIDDEN = 48          # keyword_fc output
FC_HIDDEN = 192         # fc output
LOGIT_PAD = 128         # lane-dense padded logits width (sliced to NUM_LABELS outside)
LN_EPS = 1e-12

LAYER_KEYS = ("qkv_w", "qkv_b", "o_w", "o_b", "ln1_g", "ln1_b",
              "i_w", "i_b", "f_w", "f_b", "ln2_g", "ln2_b")


# ----------------------------------------------------------------------------
# In-kernel helpers (f32 math)
# ----------------------------------------------------------------------------
def _layernorm(x, g, b):
    mu = jnp.mean(x, axis=-1, keepdims=True)
    var = jnp.mean((x - mu) ** 2, axis=-1, keepdims=True)
    return (x - mu) * jax.lax.rsqrt(var + LN_EPS) * g + b


def _gelu(x):
    # TODO(synk): HF PubMedBERT uses erf-GELU; tanh approximation is numerically close.
    c = math.sqrt(2.0 / math.pi)
    return 0.5 * x * (1.0 + jnp.tanh(c * (x + 0.044715 * x * x * x)))


_BF = jnp.bfloat16


# ----------------------------------------------------------------------------
# Single fused kernel: grid=(NUM_LAYERS,)
#   layer 0     : embedding LayerNorm + attention-mask precompute (into scratch)
#   every layer : fused QKV matmul, MHA, out-proj, LN1, GELU FFN, LN2
#   last layer  : CLS pooler tanh + keyword_fc + fc + classifier -> padded logits
# Hidden state is carried in a VMEM scratch; only (B, LOGIT_PAD) leaves VMEM.
# ----------------------------------------------------------------------------
def _encoder_head_kernel(
        # fixed inputs (resident for the whole grid)
        emb_ref, mask_ref, eg_ref, eb_ref, kw_ref,
        pw_ref, pb_ref, kww_ref, kwb_ref, wfp_ref, wfk_ref, fcb_ref, cw_ref, cb_ref,
        # per-layer stacked weights (streamed / double-buffered by BlockSpec)
        qkvw_ref, qkvb_ref, ow_ref, ob_ref, g1_ref, b1_ref,
        iw_ref, ib_ref, fw_ref, fb_ref, g2_ref, b2_ref,
        # output
        logits_ref,
        # scratch
        h_ref, neg_ref,
        *, batch, seq, heads, head_dim):
    layer = pl.program_id(0)
    hidden = heads * head_dim

    # ---- layer 0: embeddings -> LayerNorm; hoist additive mask into scratch ----
    @pl.when(layer == 0)
    def _():
        h_ref[...] = _layernorm(emb_ref[...], eg_ref[...], eb_ref[...])
        neg_ref[...] = (1.0 - mask_ref[...]) * -1e9

    h = h_ref[...]                                   # (B*S, H) f32, VMEM-resident

    # ---- fused QKV projection: one lane-dense (H, 3H) bf16 matmul ----
    qkv = jnp.dot(h.astype(_BF), qkvw_ref[0],
                  preferred_element_type=jnp.float32) + qkvb_ref[0]

    neg = neg_ref[...][:, None, :]                   # (B, 1, S), precomputed once

    # ---- multi-head attention (1/sqrt(d) already folded into Q weights) ----
    # TODO(synk): replace the per-head loop with a single all-heads einsum once
    # Mosaic supports multi-batch-dim dot_general; heads=2 keeps this cheap.
    ctx_heads = []
    for hh in range(heads):
        lo = hh * head_dim
        q = qkv[:, lo:lo + head_dim].reshape(batch, seq, head_dim)
        k = qkv[:, hidden + lo:hidden + lo + head_dim].reshape(batch, seq, head_dim)
        v = qkv[:, 2 * hidden + lo:2 * hidden + lo + head_dim].reshape(batch, seq, head_dim)

        s = jnp.einsum("bqd,bkd->bqk", q.astype(_BF), k.astype(_BF),
                       preferred_element_type=jnp.float32)
        s = s + neg
        s = s - jnp.max(s, axis=-1, keepdims=True)
        p = jnp.exp(s)
        # TODO(synk): approx reciprocal (EUP) will not bit-match an exact softmax.
        p = p * pl.reciprocal(jnp.sum(p, axis=-1, keepdims=True), approx=True)
        c = jnp.einsum("bqk,bkd->bqd", p.astype(_BF), v.astype(_BF),
                       preferred_element_type=jnp.float32)
        ctx_heads.append(c.reshape(batch * seq, head_dim))
    ctx = jnp.concatenate(ctx_heads, axis=-1)        # (B*S, H)

    # ---- output projection + residual + LN1 ----
    attn_out = jnp.dot(ctx.astype(_BF), ow_ref[0],
                       preferred_element_type=jnp.float32) + ob_ref[0]
    h = _layernorm(attn_out + h, g1_ref[0], b1_ref[0])

    # ---- FFN (GELU) + residual + LN2 ----
    inter = _gelu(jnp.dot(h.astype(_BF), iw_ref[0],
                          preferred_element_type=jnp.float32) + ib_ref[0])
    ffn = jnp.dot(inter.astype(_BF), fw_ref[0],
                  preferred_element_type=jnp.float32) + fb_ref[0]
    h_new = _layernorm(ffn + h, g2_ref[0], b2_ref[0])
    h_ref[...] = h_new

    # ---- last layer: fused pooler + keyword_fc + fc + classifier ----
    @pl.when(layer == pl.num_programs(0) - 1)
    def _():
        # CLS rows extracted from the VMEM-resident hidden state (no HBM gather).
        cls = h_new.reshape(batch, seq, hidden)[:, 0, :]            # (B, H)
        pooled = jnp.tanh(
            jnp.dot(cls.astype(_BF), pw_ref[...],
                    preferred_element_type=jnp.float32) + pb_ref[...])
        kw_out = jnp.maximum(
            jnp.dot(kw_ref[...].astype(_BF), kww_ref[...],
                    preferred_element_type=jnp.float32) + kwb_ref[...], 0.0)
        # relu(fc(cat([pooled, kw_out]))) == relu(pooled @ Wp + kw_out @ Wk + b)
        x = jnp.dot(pooled.astype(_BF), wfp_ref[...],
                    preferred_element_type=jnp.float32)
        x = x + jnp.dot(kw_out.astype(_BF), wfk_ref[...],
                        preferred_element_type=jnp.float32)
        x = jnp.maximum(x + fcb_ref[...], 0.0)
        # dropout(p=0.2) is identity at inference time.
        # Classifier weights are zero-padded to 128 lanes -> lane-dense store.
        logits_ref[...] = (jnp.dot(x.astype(_BF), cw_ref[...],
                                   preferred_element_type=jnp.float32) + cb_ref[...])


def encoder_head_forward(params, emb, mask_f, kw, batch, seq):
    M, H = emb.shape

    fixed_args = [
        emb, mask_f, params["emb_ln_g"], params["emb_ln_b"], kw,
        params["pool_w"], params["pool_b"],
        params["kw_w"], params["kw_b"],
        params["fc_w_pool"], params["fc_w_kw"], params["fc_b"],
        params["cls_w"], params["cls_b"],
    ]
    layer_args = [params[k] for k in LAYER_KEYS]

    def fixed_spec(a):
        n = a.ndim
        return pl.BlockSpec(a.shape, lambda l, _n=n: (0,) * _n)

    def layer_spec(a):
        n = a.ndim - 1
        return pl.BlockSpec((1,) + a.shape[1:], lambda l, _n=n: (l,) + (0,) * _n)

    return pl.pallas_call(
        partial(_encoder_head_kernel, batch=batch, seq=seq,
                heads=NUM_HEADS, head_dim=HEAD_DIM),
        out_shape=jax.ShapeDtypeStruct((batch, LOGIT_PAD), jnp.float32),
        grid=(NUM_LAYERS,),
        in_specs=[fixed_spec(a) for a in fixed_args]
                 + [layer_spec(a) for a in layer_args],
        out_specs=pl.BlockSpec((batch, LOGIT_PAD), lambda l: (0, 0)),
        scratch_shapes=[pltpu.VMEM((M, H), jnp.float32),          # hidden state
                        pltpu.VMEM((batch, seq), jnp.float32)],   # additive mask
        compiler_params=pltpu.CompilerParams(
            dimension_semantics=("arbitrary",),
            vmem_limit_bytes=64 * 1024 * 1024),
    )(*fixed_args, *layer_args)


# ----------------------------------------------------------------------------
# Parameter init (deterministic, synthetic — not a checkpoint load)
# Weights feeding the MXU are stored in bf16; biases / LN params stay f32.
# ----------------------------------------------------------------------------
def init_params(key):
    def nrm(k, shape, scale=0.02):
        return scale * jax.random.normal(k, shape, dtype=jnp.float32)

    keys = iter(jax.random.split(key, 64))
    L, H, I = NUM_LAYERS, HIDDEN, INTERMEDIATE

    # q/k/v fused into a single (H, 3H) projection; fold 1/sqrt(head_dim) into Q.
    qkv_w = nrm(next(keys), (L, H, 3 * H))
    qkv_w = qkv_w.at[:, :, :H].multiply(1.0 / math.sqrt(HEAD_DIM))
    qkv_b = jnp.zeros((L, 1, 3 * H), jnp.float32)   # Q-bias scale fold is a no-op for 0

    # Classifier zero-padded to LOGIT_PAD lanes for a lane-dense output store.
    cls_w = jnp.zeros((FC_HIDDEN, LOGIT_PAD), jnp.float32)
    cls_w = cls_w.at[:, :NUM_LABELS].set(nrm(next(keys), (FC_HIDDEN, NUM_LABELS)))

    return {
        "word_emb": nrm(next(keys), (VOCAB, H)),
        "pos_emb": nrm(next(keys), (MAX_POS, H)),
        "type_emb": nrm(next(keys), (TYPE_VOCAB, H)),
        "emb_ln_g": jnp.ones((1, H), jnp.float32),
        "emb_ln_b": jnp.zeros((1, H), jnp.float32),
        "qkv_w": qkv_w.astype(_BF),
        "qkv_b": qkv_b,
        "o_w": nrm(next(keys), (L, H, H)).astype(_BF),
        "o_b": jnp.zeros((L, 1, H), jnp.float32),
        "ln1_g": jnp.ones((L, 1, H), jnp.float32),
        "ln1_b": jnp.zeros((L, 1, H), jnp.float32),
        "i_w": nrm(next(keys), (L, H, I)).astype(_BF),
        "i_b": jnp.zeros((L, 1, I), jnp.float32),
        "f_w": nrm(next(keys), (L, I, H)).astype(_BF),
        "f_b": jnp.zeros((L, 1, H), jnp.float32),
        "ln2_g": jnp.ones((L, 1, H), jnp.float32),
        "ln2_b": jnp.zeros((L, 1, H), jnp.float32),
        "pool_w": nrm(next(keys), (H, H)).astype(_BF),
        "pool_b": jnp.zeros((1, H), jnp.float32),
        "kw_w": nrm(next(keys), (NUM_KEYWORDS, KW_HIDDEN)).astype(_BF),
        "kw_b": jnp.zeros((1, KW_HIDDEN), jnp.float32),
        # fc split into the pooled-input and keyword-input halves (== cat + fc).
        "fc_w_pool": nrm(next(keys), (H, FC_HIDDEN)).astype(_BF),
        "fc_w_kw": nrm(next(keys), (KW_HIDDEN, FC_HIDDEN)).astype(_BF),
        "fc_b": jnp.zeros((1, FC_HIDDEN), jnp.float32),
        "cls_w": cls_w.astype(_BF),
        "cls_b": jnp.zeros((1, LOGIT_PAD), jnp.float32),
    }


# ----------------------------------------------------------------------------
# Forward pass: embedding gather in JAX glue, everything else in ONE Pallas kernel.
# ----------------------------------------------------------------------------
def pubmedbert_classifier_forward(params, input_ids, attention_mask, keyword_features):
    B, S = input_ids.shape

    # TODO(synk): embedding-table gather stays in JAX glue; token_type_ids assumed
    # all-zero (single segment), matching the reference forward call.
    word = jnp.take(params["word_emb"], input_ids, axis=0)            # (B, S, H)
    pos = params["pos_emb"][:S][None, :, :]
    typ = params["type_emb"][0][None, None, :]
    emb = (word + pos + typ).reshape(B * S, HIDDEN)
    mask_f = attention_mask.astype(jnp.float32)

    logits_padded = encoder_head_forward(params, emb, mask_f,
                                         keyword_features, B, S)      # (B, 128)
    return logits_padded[:, :NUM_LABELS]


# ----------------------------------------------------------------------------
if __name__ == "__main__":
    key = jax.random.PRNGKey(0)
    k_param, k_ids, k_kw = jax.random.split(key, 3)

    B, S = 2, 8
    params = init_params(k_param)

    input_ids = jax.random.randint(k_ids, (B, S), 0, VOCAB, dtype=jnp.int32)
    attention_mask = jnp.ones((B, S), dtype=jnp.int32)
    attention_mask = attention_mask.at[1, -2:].set(0)        # exercise masking
    keyword_features = jax.random.normal(k_kw, (B, NUM_KEYWORDS), dtype=jnp.float32)

    fwd = jax.jit(pubmedbert_classifier_forward)
    logits = fwd(params, input_ids, attention_mask, keyword_features)
    jax.block_until_ready(logits)
    assert logits.shape == (B, NUM_LABELS) and logits.dtype == jnp.float32
    assert bool(jnp.all(jnp.isfinite(logits)))
    print("KERNEL_OK")
</pallas_src>

<mosaic_0001>
module attributes {stable_mosaic.version = 11 : i64} {
  func.func @_encoder_head_kernel(%arg0: i32, %arg1: memref<16x32xf32, #tpu.memory_space<vmem>>, %arg2: memref<2x8xf32, #tpu.memory_space<vmem>>, %arg3: memref<1x32xf32, #tpu.memory_space<vmem>>, %arg4: memref<1x32xf32, #tpu.memory_space<vmem>>, %arg5: memref<2x10xf32, #tpu.memory_space<vmem>>, %arg6: memref<32x32xbf16, #tpu.memory_space<vmem>>, %arg7: memref<1x32xf32, #tpu.memory_space<vmem>>, %arg8: memref<10x48xbf16, #tpu.memory_space<vmem>>, %arg9: memref<1x48xf32, #tpu.memory_space<vmem>>, %arg10: memref<32x192xbf16, #tpu.memory_space<vmem>>, %arg11: memref<48x192xbf16, #tpu.memory_space<vmem>>, %arg12: memref<1x192xf32, #tpu.memory_space<vmem>>, %arg13: memref<192x128xbf16, #tpu.memory_space<vmem>>, %arg14: memref<1x128xf32, #tpu.memory_space<vmem>>, %arg15: memref<1x32x96xbf16, #tpu.memory_space<vmem>>, %arg16: memref<1x1x96xf32, #tpu.memory_space<vmem>>, %arg17: memref<1x32x32xbf16, #tpu.memory_space<vmem>>, %arg18: memref<1x1x32xf32, #tpu.memory_space<vmem>>, %arg19: memref<1x1x32xf32, #tpu.memory_space<vmem>>, %arg20: memref<1x1x32xf32, #tpu.memory_space<vmem>>, %arg21: memref<1x32x64xbf16, #tpu.memory_space<vmem>>, %arg22: memref<1x1x64xf32, #tpu.memory_space<vmem>>, %arg23: memref<1x64x32xbf16, #tpu.memory_space<vmem>>, %arg24: memref<1x1x32xf32, #tpu.memory_space<vmem>>, %arg25: memref<1x1x32xf32, #tpu.memory_space<vmem>>, %arg26: memref<1x1x32xf32, #tpu.memory_space<vmem>>, %arg27: memref<2x128xf32, #tpu.memory_space<vmem>>, %arg28: memref<16x32xf32, #tpu.memory_space<vmem>>, %arg29: memref<2x8xf32, #tpu.memory_space<vmem>>) attributes {dimension_semantics = [#tpu.dimension_semantics<arbitrary>], iteration_bounds = array<i64: 2>, scalar_prefetch = 0 : i64, scratch_operands = 2 : i64, tpu.core_type = #tpu.core_type<tc>, window_params = [{pipeline_mode = #tpu.pipeline_mode<synchronous>, transform_indices = @transform_0, window_bounds = array<i64: 16, 32>}, {pipeline_mode = #tpu.pipeline_mode<synchronous>, transform_indices = @transform_1, window_bounds = array<i64: 2, 8>}, {pipeline_mode = #tpu.pipeline_mode<synchronous>, transform_indices = @transform_2, window_bounds = array<i64: 1, 32>}, {pipeline_mode = #tpu.pipeline_mode<synchronous>, transform_indices = @transform_3, window_bounds = array<i64: 1, 32>}, {pipeline_mode = #tpu.pipeline_mode<synchronous>, transform_indices = @transform_4, window_bounds = array<i64: 2, 10>}, {pipeline_mode = #tpu.pipeline_mode<synchronous>, transform_indices = @transform_5, window_bounds = array<i64: 32, 32>}, {pipeline_mode = #tpu.pipeline_mode<synchronous>, transform_indices = @transform_6, window_bounds = array<i64: 1, 32>}, {pipeline_mode = #tpu.pipeline_mode<synchronous>, transform_indices = @transform_7, window_bounds = array<i64: 10, 48>}, {pipeline_mode = #tpu.pipeline_mode<synchronous>, transform_indices = @transform_8, window_bounds = array<i64: 1, 48>}, {pipeline_mode = #tpu.pipeline_mode<synchronous>, transform_indices = @transform_9, window_bounds = array<i64: 32, 192>}, {pipeline_mode = #tpu.pipeline_mode<synchronous>, transform_indices = @transform_10, window_bounds = array<i64: 48, 192>}, {pipeline_mode = #tpu.pipeline_mode<synchronous>, transform_indices = @transform_11, window_bounds = array<i64: 1, 192>}, {pipeline_mode = #tpu.pipeline_mode<synchronous>, transform_indices = @transform_12, window_bounds = array<i64: 192, 128>}, {pipeline_mode = #tpu.pipeline_mode<synchronous>, transform_indices = @transform_13, window_bounds = array<i64: 1, 128>}, {transform_indices = @transform_14, window_bounds = array<i64: 1, 32, 96>}, {transform_indices = @transform_15, window_bounds = array<i64: 1, 1, 96>}, {transform_indices = @transform_16, window_bounds = array<i64: 1, 32, 32>}, {transform_indices = @transform_17, window_bounds = array<i64: 1, 1, 32>}, {transform_indices = @transform_18, window_bounds = array<i64: 1, 1, 32>}, {transform_indices = @transform_19, window_bounds = array<i64: 1, 1, 32>}, {transform_indices = @transform_20, window_bounds = array<i64: 1, 32, 64>}, {transform_indices = @transform_21, window_bounds = array<i64: 1, 1, 64>}, {transform_indices = @transform_22, window_bounds = array<i64: 1, 64, 32>}, {transform_indices = @transform_23, window_bounds = array<i64: 1, 1, 32>}, {transform_indices = @transform_24, window_bounds = array<i64: 1, 1, 32>}, {transform_indices = @transform_25, window_bounds = array<i64: 1, 1, 32>}, {pipeline_mode = #tpu.pipeline_mode<synchronous>, transform_indices = @transform_26, window_bounds = array<i64: 2, 128>}]} {
    %c0_i32 = arith.constant 0 : i32
    %0 = arith.cmpi eq, %arg0, %c0_i32 : i32
    %1 = arith.extui %0 : i1 to i32
    %c0_i32_0 = arith.constant 0 : i32
    %2 = arith.cmpi ne, %1, %c0_i32_0 : i32
    scf.if %2 {
      %c0_68 = arith.constant 0 : index
      %c0_69 = arith.constant 0 : index
      %160 = vector.load %arg1[%c0_68, %c0_69] : memref<16x32xf32, #tpu.memory_space<vmem>>, vector<16x32xf32>
      %c0_70 = arith.constant 0 : index
      %c0_71 = arith.constant 0 : index
      %161 = vector.load %arg3[%c0_70, %c0_71] : memref<1x32xf32, #tpu.memory_space<vmem>>, vector<1x32xf32>
      %c0_72 = arith.constant 0 : index
      %c0_73 = arith.constant 0 : index
      %162 = vector.load %arg4[%c0_72, %c0_73] : memref<1x32xf32, #tpu.memory_space<vmem>>, vector<1x32xf32>
      %cst_74 = arith.constant dense<0.000000e+00> : vector<16xf32>
      %163 = vector.multi_reduction <add>, %160, %cst_74 [1] : vector<16x32xf32> to vector<16xf32>
      %164 = vector.shape_cast %163 : vector<16xf32> to vector<16x1xf32>
      %cst_75 = arith.constant 3.200000e+01 : f32
      %165 = vector.broadcast %cst_75 : f32 to vector<16x1xf32>
      %166 = arith.divf %164, %165 : vector<16x1xf32>
      %167 = vector.broadcast %166 : vector<16x1xf32> to vector<16x32xf32>
      %168 = arith.subf %160, %167 : vector<16x32xf32>
      %169 = arith.mulf %168, %168 : vector<16x32xf32>
      %cst_76 = arith.constant dense<0.000000e+00> : vector<16xf32>
      %170 = vector.multi_reduction <add>, %169, %cst_76 [1] : vector<16x32xf32> to vector<16xf32>
      %171 = vector.shape_cast %170 : vector<16xf32> to vector<16x1xf32>
      %cst_77 = arith.constant 3.200000e+01 : f32
      %172 = vector.broadcast %cst_77 : f32 to vector<16x1xf32>
      %173 = arith.divf %171, %172 : vector<16x1xf32>
      %174 = vector.broadcast %166 : vector<16x1xf32> to vector<16x32xf32>
      %175 = arith.subf %160, %174 : vector<16x32xf32>
      %cst_78 = arith.constant 9.99999996E-13 : f32
      %176 = vector.broadcast %cst_78 : f32 to vector<16x1xf32>
      %177 = arith.addf %173, %176 : vector<16x1xf32>
      %178 = math.rsqrt %177 : vector<16x1xf32>
      %179 = vector.broadcast %178 : vector<16x1xf32> to vector<16x32xf32>
      %180 = arith.mulf %175, %179 : vector<16x32xf32>
      %181 = vector.broadcast %161 : vector<1x32xf32> to vector<16x32xf32>
      %182 = arith.mulf %180, %181 : vector<16x32xf32>
      %183 = vector.broadcast %162 : vector<1x32xf32> to vector<16x32xf32>
      %184 = arith.addf %182, %183 : vector<16x32xf32>
      %c0_79 = arith.constant 0 : index
      %c0_80 = arith.constant 0 : index
      %185 = vector.load %arg28[%c0_79, %c0_80] : memref<16x32xf32, #tpu.memory_space<vmem>>, vector<16x32xf32>
      tpu.vector_store %arg28[%c0_79, %c0_80], %184 {strides = array<i32>} : memref<16x32xf32, #tpu.memory_space<vmem>>, vector<16x32xf32>,
      %c0_81 = arith.constant 0 : index
      %c0_82 = arith.constant 0 : index
      %186 = vector.load %arg2[%c0_81, %c0_82] : memref<2x8xf32, #tpu.memory_space<vmem>>, vector<2x8xf32>
      %cst_83 = arith.constant 1.000000e+00 : f32
      %187 = vector.broadcast %cst_83 : f32 to vector<2x8xf32>
      %188 = arith.subf %187, %186 : vector<2x8xf32>
      %cst_84 = arith.constant -1.000000e+09 : f32
      %189 = vector.broadcast %cst_84 : f32 to vector<2x8xf32>
      %190 = arith.mulf %188, %189 : vector<2x8xf32>
      %c0_85 = arith.constant 0 : index
      %c0_86 = arith.constant 0 : index
      %191 = vector.load %arg29[%c0_85, %c0_86] : memref<2x8xf32, #tpu.memory_space<vmem>>, vector<2x8xf32>
      tpu.vector_store %arg29[%c0_85, %c0_86], %190 {strides = array<i32>} : memref<2x8xf32, #tpu.memory_space<vmem>>, vector<2x8xf32>,
    } else {
    }
    %c0 = arith.constant 0 : index
    %c0_1 = arith.constant 0 : index
    %3 = vector.load %arg28[%c0, %c0_1] : memref<16x32xf32, #tpu.memory_space<vmem>>, vector<16x32xf32>
    %4 = arith.truncf %3 : vector<16x32xf32> to vector<16x32xbf16>
    %c0_2 = arith.constant 0 : index
    %c0_3 = arith.constant 0 : index
    %c0_4 = arith.constant 0 : index
    %5 = vector.load %arg15[%c0_2, %c0_3, %c0_4] : memref<1x32x96xbf16, #tpu.memory_space<vmem>>, vector<1x32x96xbf16>
    %6 = vector.shape_cast %5 : vector<1x32x96xbf16> to vector<32x96xbf16>
    %cst = arith.constant dense<0.000000e+00> : vector<16x96xf32>
    %7 = tpu.matmul %4, %6, %cst {dimension_numbers = #tpu.dot_dimension_numbers<[1], [0], [0], [1], [0, 0, 1, 1], [], []>} : vector<16x32xbf16>, vector<32x96xbf16>, vector<16x96xf32> -> vector<16x96xf32>
    %c0_5 = arith.constant 0 : index
    %c0_6 = arith.constant 0 : index
    %c0_7 = arith.constant 0 : index
    %8 = vector.load %arg16[%c0_5, %c0_6, %c0_7] : memref<1x1x96xf32, #tpu.memory_space<vmem>>, vector<1x1x96xf32>
    %9 = vector.shape_cast %8 : vector<1x1x96xf32> to vector<1x96xf32>
    %10 = vector.broadcast %9 : vector<1x96xf32> to vector<16x96xf32>
    %11 = arith.addf %7, %10 : vector<16x96xf32>
    %c0_8 = arith.constant 0 : index
    %c0_9 = arith.constant 0 : index
    %12 = vector.load %arg29[%c0_8, %c0_9] : memref<2x8xf32, #tpu.memory_space<vmem>>, vector<2x8xf32>
    %13 = vector.shape_cast %12 : vector<2x8xf32> to vector<2x1x8xf32>
    %14 = vector.extract_strided_slice %11 {offsets = [0, 0], sizes = [16, 16], strides = [1, 1]} : vector<16x96xf32> to vector<16x16xf32>
    %15 = vector.shape_cast %14 : vector<16x16xf32> to vector<2x8x16xf32>
    %16 = vector.extract_strided_slice %11 {offsets = [0, 32], sizes = [16, 16], strides = [1, 1]} : vector<16x96xf32> to vector<16x16xf32>
    %17 = vector.shape_cast %16 : vector<16x16xf32> to vector<2x8x16xf32>
    %18 = vector.extract_strided_slice %11 {offsets = [0, 64], sizes = [16, 16], strides = [1, 1]} : vector<16x96xf32> to vector<16x16xf32>
    %19 = vector.shape_cast %18 : vector<16x16xf32> to vector<2x8x16xf32>
    %20 = arith.truncf %15 : vector<2x8x16xf32> to vector<2x8x16xbf16>
    %21 = arith.truncf %17 : vector<2x8x16xf32> to vector<2x8x16xbf16>
    "tpu.trace_start"() <{level = 10 : i32, message = "bqd,bkd->bqk"}> : () -> ()
    %cst_10 = arith.constant dense<0.000000e+00> : vector<2x8x8xf32>
    %22 = tpu.matmul %20, %21, %cst_10 {dimension_numbers = #tpu.dot_dimension_numbers<[2], [2], [1], [1], [0, 0, 0, 1, 1, 1], [0], [0]>} : vector<2x8x16xbf16>, vector<2x8x16xbf16>, vector<2x8x8xf32> -> vector<2x8x8xf32>
    "tpu.trace_stop"() : () -> ()
    %23 = vector.broadcast %13 : vector<2x1x8xf32> to vector<2x8x8xf32>
    %24 = arith.addf %22, %23 : vector<2x8x8xf32>
    %cst_11 = arith.constant dense<0xFF800000> : vector<2x8xf32>
    %25 = vector.multi_reduction <maximumf>, %24, %cst_11 [2] : vector<2x8x8xf32> to vector<2x8xf32>
    %26 = vector.shape_cast %25 : vector<2x8xf32> to vector<2x8x1xf32>
    %27 = vector.broadcast %26 : vector<2x8x1xf32> to vector<2x8x8xf32>
    %28 = arith.subf %24, %27 : vector<2x8x8xf32>
    %29 = math.exp %28 : vector<2x8x8xf32>
    %cst_12 = arith.constant dense<0.000000e+00> : vector<2x8xf32>
    %30 = vector.multi_reduction <add>, %29, %cst_12 [2] : vector<2x8x8xf32> to vector<2x8xf32>
    %31 = vector.shape_cast %30 : vector<2x8xf32> to vector<2x8x1xf32>
    %32 = tpu.reciprocal %31 {approx = true} : vector<2x8x1xf32> -> vector<2x8x1xf32>
    %33 = vector.broadcast %32 : vector<2x8x1xf32> to vector<2x8x8xf32>
    %34 = arith.mulf %29, %33 : vector<2x8x8xf32>
    %35 = arith.truncf %34 : vector<2x8x8xf32> to vector<2x8x8xbf16>
    %36 = arith.truncf %19 : vector<2x8x16xf32> to vector<2x8x16xbf16>
    "tpu.trace_start"() <{level = 10 : i32, message = "bqk,bkd->bqd"}> : () -> ()
    %cst_13 = arith.constant dense<0.000000e+00> : vector<2x8x16xf32>
    %37 = tpu.matmul %35, %36, %cst_13 {dimension_numbers = #tpu.dot_dimension_numbers<[2], [1], [1], [2], [0, 0, 0, 1, 1, 2], [0], [0]>} : vector<2x8x8xbf16>, vector<2x8x16xbf16>, vector<2x8x16xf32> -> vector<2x8x16xf32>
    "tpu.trace_stop"() : () -> ()
    %38 = vector.shape_cast %37 : vector<2x8x16xf32> to vector<16x16xf32>
    %39 = vector.extract_strided_slice %11 {offsets = [0, 16], sizes = [16, 16], strides = [1, 1]} : vector<16x96xf32> to vector<16x16xf32>
    %40 = vector.shape_cast %39 : vector<16x16xf32> to vector<2x8x16xf32>
    %41 = vector.extract_strided_slice %11 {offsets = [0, 48], sizes = [16, 16], strides = [1, 1]} : vector<16x96xf32> to vector<16x16xf32>
    %42 = vector.shape_cast %41 : vector<16x16xf32> to vector<2x8x16xf32>
    %43 = vector.extract_strided_slice %11 {offsets = [0, 80], sizes = [16, 16], strides = [1, 1]} : vector<16x96xf32> to vector<16x16xf32>
    %44 = vector.shape_cast %43 : vector<16x16xf32> to vector<2x8x16xf32>
    %45 = arith.truncf %40 : vector<2x8x16xf32> to vector<2x8x16xbf16>
    %46 = arith.truncf %42 : vector<2x8x16xf32> to vector<2x8x16xbf16>
    "tpu.trace_start"() <{level = 10 : i32, message = "bqd,bkd->bqk"}> : () -> ()
    %cst_14 = arith.constant dense<0.000000e+00> : vector<2x8x8xf32>
    %47 = tpu.matmul %45, %46, %cst_14 {dimension_numbers = #tpu.dot_dimension_numbers<[2], [2], [1], [1], [0, 0, 0, 1, 1, 1], [0], [0]>} : vector<2x8x16xbf16>, vector<2x8x16xbf16>, vector<2x8x8xf32> -> vector<2x8x8xf32>
    "tpu.trace_stop"() : () -> ()
    %48 = vector.broadcast %13 : vector<2x1x8xf32> to vector<2x8x8xf32>
    %49 = arith.addf %47, %48 : vector<2x8x8xf32>
    %cst_15 = arith.constant dense<0xFF800000> : vector<2x8xf32>
    %50 = vector.multi_reduction <maximumf>, %49, %cst_15 [2] : vector<2x8x8xf32> to vector<2x8xf32>
    %51 = vector.shape_cast %50 : vector<2x8xf32> to vector<2x8x1xf32>
    %52 = vector.broadcast %51 : vector<2x8x1xf32> to vector<2x8x8xf32>
    %53 = arith.subf %49, %52 : vector<2x8x8xf32>
    %54 = math.exp %53 : vector<2x8x8xf32>
    %cst_16 = arith.constant dense<0.000000e+00> : vector<2x8xf32>
    %55 = vector.multi_reduction <add>, %54, %cst_16 [2] : vector<2x8x8xf32> to vector<2x8xf32>
    %56 = vector.shape_cast %55 : vector<2x8xf32> to vector<2x8x1xf32>
    %57 = tpu.reciprocal %56 {approx = true} : vector<2x8x1xf32> -> vector<2x8x1xf32>
    %58 = vector.broadcast %57 : vector<2x8x1xf32> to vector<2x8x8xf32>
    %59 = arith.mulf %54, %58 : vector<2x8x8xf32>
    %60 = arith.truncf %59 : vector<2x8x8xf32> to vector<2x8x8xbf16>
    %61 = arith.truncf %44 : vector<2x8x16xf32> to vector<2x8x16xbf16>
    "tpu.trace_start"() <{level = 10 : i32, message = "bqk,bkd->bqd"}> : () -> ()
    %cst_17 = arith.constant dense<0.000000e+00> : vector<2x8x16xf32>
    %62 = tpu.matmul %60, %61, %cst_17 {dimension_numbers = #tpu.dot_dimension_numbers<[2], [1], [1], [2], [0, 0, 0, 1, 1, 2], [0], [0]>} : vector<2x8x8xbf16>, vector<2x8x16xbf16>, vector<2x8x16xf32> -> vector<2x8x16xf32>
    "tpu.trace_stop"() : () -> ()
    %63 = vector.shape_cast %62 : vector<2x8x16xf32> to vector<16x16xf32>
    %64 = tpu.concatenate %38, %63 in 1 : vector<16x16xf32>, vector<16x16xf32> -> vector<16x32xf32>
    %65 = arith.truncf %64 : vector<16x32xf32> to vector<16x32xbf16>
    %c0_18 = arith.constant 0 : index
    %c0_19 = arith.constant 0 : index
    %c0_20 = arith.constant 0 : index
    %66 = vector.load %arg17[%c0_18, %c0_19, %c0_20] : memref<1x32x32xbf16, #tpu.memory_space<vmem>>, vector<1x32x32xbf16>
    %67 = vector.shape_cast %66 : vector<1x32x32xbf16> to vector<32x32xbf16>
    %cst_21 = arith.constant dense<0.000000e+00> : vector<16x32xf32>
    %68 = tpu.matmul %65, %67, %cst_21 {dimension_numbers = #tpu.dot_dimension_numbers<[1], [0], [0], [1], [0, 0, 1, 1], [], []>} : vector<16x32xbf16>, vector<32x32xbf16>, vector<16x32xf32> -> vector<16x32xf32>
    %c0_22 = arith.constant 0 : index
    %c0_23 = arith.constant 0 : index
    %c0_24 = arith.constant 0 : index
    %69 = vector.load %arg18[%c0_22, %c0_23, %c0_24] : memref<1x1x32xf32, #tpu.memory_space<vmem>>, vector<1x1x32xf32>
    %70 = vector.shape_cast %69 : vector<1x1x32xf32> to vector<1x32xf32>
    %71 = vector.broadcast %70 : vector<1x32xf32> to vector<16x32xf32>
    %72 = arith.addf %68, %71 : vector<16x32xf32>
    %73 = arith.addf %72, %3 : vector<16x32xf32>
    %c0_25 = arith.constant 0 : index
    %c0_26 = arith.constant 0 : index
    %c0_27 = arith.constant 0 : index
    %74 = vector.load %arg19[%c0_25, %c0_26, %c0_27] : memref<1x1x32xf32, #tpu.memory_space<vmem>>, vector<1x1x32xf32>
    %75 = vector.shape_cast %74 : vector<1x1x32xf32> to vector<1x32xf32>
    %c0_28 = arith.constant 0 : index
    %c0_29 = arith.constant 0 : index
    %c0_30 = arith.constant 0 : index
    %76 = vector.load %arg20[%c0_28, %c0_29, %c0_30] : memref<1x1x32xf32, #tpu.memory_space<vmem>>, vector<1x1x32xf32>
    %77 = vector.shape_cast %76 : vector<1x1x32xf32> to vector<1x32xf32>
    %cst_31 = arith.constant dense<0.000000e+00> : vector<16xf32>
    %78 = vector.multi_reduction <add>, %73, %cst_31 [1] : vector<16x32xf32> to vector<16xf32>
    %79 = vector.shape_cast %78 : vector<16xf32> to vector<16x1xf32>
    %cst_32 = arith.constant 3.200000e+01 : f32
    %80 = vector.broadcast %cst_32 : f32 to vector<16x1xf32>
    %81 = arith.divf %79, %80 : vector<16x1xf32>
    %82 = vector.broadcast %81 : vector<16x1xf32> to vector<16x32xf32>
    %83 = arith.subf %73, %82 : vector<16x32xf32>
    %84 = arith.mulf %83, %83 : vector<16x32xf32>
    %cst_33 = arith.constant dense<0.000000e+00> : vector<16xf32>
    %85 = vector.multi_reduction <add>, %84, %cst_33 [1] : vector<16x32xf32> to vector<16xf32>
    %86 = vector.shape_cast %85 : vector<16xf32> to vector<16x1xf32>
    %cst_34 = arith.constant 3.200000e+01 : f32
    %87 = vector.broadcast %cst_34 : f32 to vector<16x1xf32>
    %88 = arith.divf %86, %87 : vector<16x1xf32>
    %89 = vector.broadcast %81 : vector<16x1xf32> to vector<16x32xf32>
    %90 = arith.subf %73, %89 : vector<16x32xf32>
    %cst_35 = arith.constant 9.99999996E-13 : f32
    %91 = vector.broadcast %cst_35 : f32 to vector<16x1xf32>
    %92 = arith.addf %88, %91 : vector<16x1xf32>
    %93 = math.rsqrt %92 : vector<16x1xf32>
    %94 = vector.broadcast %93 : vector<16x1xf32> to vector<16x32xf32>
    %95 = arith.mulf %90, %94 : vector<16x32xf32>
    %96 = vector.broadcast %75 : vector<1x32xf32> to vector<16x32xf32>
    %97 = arith.mulf %95, %96 : vector<16x32xf32>
    %98 = vector.broadcast %77 : vector<1x32xf32> to vector<16x32xf32>
    %99 = arith.addf %97, %98 : vector<16x32xf32>
    %100 = arith.truncf %99 : vector<16x32xf32> to vector<16x32xbf16>
    %c0_36 = arith.constant 0 : index
    %c0_37 = arith.constant 0 : index
    %c0_38 = arith.constant 0 : index
    %101 = vector.load %arg21[%c0_36, %c0_37, %c0_38] : memref<1x32x64xbf16, #tpu.memory_space<vmem>>, vector<1x32x64xbf16>
    %102 = vector.shape_cast %101 : vector<1x32x64xbf16> to vector<32x64xbf16>
    %cst_39 = arith.constant dense<0.000000e+00> : vector<16x64xf32>
    %103 = tpu.matmul %100, %102, %cst_39 {dimension_numbers = #tpu.dot_dimension_numbers<[1], [0], [0], [1], [0, 0, 1, 1], [], []>} : vector<16x32xbf16>, vector<32x64xbf16>, vector<16x64xf32> -> vector<16x64xf32>
    %c0_40 = arith.constant 0 : index
    %c0_41 = arith.constant 0 : index
    %c0_42 = arith.constant 0 : index
    %104 = vector.load %arg22[%c0_40, %c0_41, %c0_42] : memref<1x1x64xf32, #tpu.memory_space<vmem>>, vector<1x1x64xf32>
    %105 = vector.shape_cast %104 : vector<1x1x64xf32> to vector<1x64xf32>
    %106 = vector.broadcast %105 : vector<1x64xf32> to vector<16x64xf32>
    %107 = arith.addf %103, %106 : vector<16x64xf32>
    %cst_43 = arith.constant 5.000000e-01 : f32
    %108 = vector.broadcast %cst_43 : f32 to vector<16x64xf32>
    %109 = arith.mulf %108, %107 : vector<16x64xf32>
    %cst_44 = arith.constant 4.471500e-02 : f32
    %110 = vector.broadcast %cst_44 : f32 to vector<16x64xf32>
    %111 = arith.mulf %110, %107 : vector<16x64xf32>
    %112 = arith.mulf %111, %107 : vector<16x64xf32>
    %113 = arith.mulf %112, %107 : vector<16x64xf32>
    %114 = arith.addf %107, %113 : vector<16x64xf32>
    %cst_45 = arith.constant 0.797884583 : f32
    %115 = vector.broadcast %cst_45 : f32 to vector<16x64xf32>
    %116 = arith.mulf %115, %114 : vector<16x64xf32>
    %117 = math.tanh %116 : vector<16x64xf32>
    %cst_46 = arith.constant 1.000000e+00 : f32
    %118 = vector.broadcast %cst_46 : f32 to vector<16x64xf32>
    %119 = arith.addf %118, %117 : vector<16x64xf32>
    %120 = arith.mulf %109, %119 : vector<16x64xf32>
    %121 = arith.truncf %120 : vector<16x64xf32> to vector<16x64xbf16>
    %c0_47 = arith.constant 0 : index
    %c0_48 = arith.constant 0 : index
    %c0_49 = arith.constant 0 : index
    %122 = vector.load %arg23[%c0_47, %c0_48, %c0_49] : memref<1x64x32xbf16, #tpu.memory_space<vmem>>, vector<1x64x32xbf16>
    %123 = vector.shape_cast %122 : vector<1x64x32xbf16> to vector<64x32xbf16>
    %cst_50 = arith.constant dense<0.000000e+00> : vector<16x32xf32>
    %124 = tpu.matmul %121, %123, %cst_50 {dimension_numbers = #tpu.dot_dimension_numbers<[1], [0], [0], [1], [0, 0, 1, 1], [], []>} : vector<16x64xbf16>, vector<64x32xbf16>, vector<16x32xf32> -> vector<16x32xf32>
    %c0_51 = arith.constant 0 : index
    %c0_52 = arith.constant 0 : index
    %c0_53 = arith.constant 0 : index
    %125 = vector.load %arg24[%c0_51, %c0_52, %c0_53] : memref<1x1x32xf32, #tpu.memory_space<vmem>>, vector<1x1x32xf32>
    %126 = vector.shape_cast %125 : vector<1x1x32xf32> to vector<1x32xf32>
    %127 = vector.broadcast %126 : vector<1x32xf32> to vector<16x32xf32>
    %128 = arith.addf %124, %127 : vector<16x32xf32>
    %129 = arith.addf %128, %99 : vector<16x32xf32>
    %c0_54 = arith.constant 0 : index
    %c0_55 = arith.constant 0 : index
    %c0_56 = arith.constant 0 : index
    %130 = vector.load %arg25[%c0_54, %c0_55, %c0_56] : memref<1x1x32xf32, #tpu.memory_space<vmem>>, vector<1x1x32xf32>
    %131 = vector.shape_cast %130 : vector<1x1x32xf32> to vector<1x32xf32>
    %c0_57 = arith.constant 0 : index
    %c0_58 = arith.constant 0 : index
    %c0_59 = arith.constant 0 : index
    %132 = vector.load %arg26[%c0_57, %c0_58, %c0_59] : memref<1x1x32xf32, #tpu.memory_space<vmem>>, vector<1x1x32xf32>
    %133 = vector.shape_cast %132 : vector<1x1x32xf32> to vector<1x32xf32>
    %cst_60 = arith.constant dense<0.000000e+00> : vector<16xf32>
    %134 = vector.multi_reduction <add>, %129, %cst_60 [1] : vector<16x32xf32> to vector<16xf32>
    %135 = vector.shape_cast %134 : vector<16xf32> to vector<16x1xf32>
    %cst_61 = arith.constant 3.200000e+01 : f32
    %136 = vector.broadcast %cst_61 : f32 to vector<16x1xf32>
    %137 = arith.divf %135, %136 : vector<16x1xf32>
    %138 = vector.broadcast %137 : vector<16x1xf32> to vector<16x32xf32>
    %139 = arith.subf %129, %138 : vector<16x32xf32>
    %140 = arith.mulf %139, %139 : vector<16x32xf32>
    %cst_62 = arith.constant dense<0.000000e+00> : vector<16xf32>
    %141 = vector.multi_reduction <add>, %140, %cst_62 [1] : vector<16x32xf32> to vector<16xf32>
    %142 = vector.shape_cast %141 : vector<16xf32> to vector<16x1xf32>
    %cst_63 = arith.constant 3.200000e+01 : f32
    %143 = vector.broadcast %cst_63 : f32 to vector<16x1xf32>
    %144 = arith.divf %142, %143 : vector<16x1xf32>
    %145 = vector.broadcast %137 : vector<16x1xf32> to vector<16x32xf32>
    %146 = arith.subf %129, %145 : vector<16x32xf32>
    %cst_64 = arith.constant 9.99999996E-13 : f32
    %147 = vector.broadcast %cst_64 : f32 to vector<16x1xf32>
    %148 = arith.addf %144, %147 : vector<16x1xf32>
    %149 = math.rsqrt %148 : vector<16x1xf32>
    %150 = vector.broadcast %149 : vector<16x1xf32> to vector<16x32xf32>
    %151 = arith.mulf %146, %150 : vector<16x32xf32>
    %152 = vector.broadcast %131 : vector<1x32xf32> to vector<16x32xf32>
    %153 = arith.mulf %151, %152 : vector<16x32xf32>
    %154 = vector.broadcast %133 : vector<1x32xf32> to vector<16x32xf32>
    %155 = arith.addf %153, %154 : vector<16x32xf32>
    %c0_65 = arith.constant 0 : index
    %c0_66 = arith.constant 0 : index
    %156 = vector.load %arg28[%c0_65, %c0_66] : memref<16x32xf32, #tpu.memory_space<vmem>>, vector<16x32xf32>
    tpu.vector_store %arg28[%c0_65, %c0_66], %155 {strides = array<i32>} : memref<16x32xf32, #tpu.memory_space<vmem>>, vector<16x32xf32>,
    %c1_i32 = arith.constant 1 : i32
    %157 = arith.cmpi eq, %arg0, %c1_i32 : i32
    %158 = arith.extui %157 : i1 to i32
    %c0_i32_67 = arith.constant 0 : i32
    %159 = arith.cmpi ne, %158, %c0_i32_67 : i32
    scf.if %159 {
      %160 = vector.shape_cast %155 : vector<16x32xf32> to vector<2x8x32xf32>
      %161 = vector.extract_strided_slice %160 {offsets = [0, 0, 0], sizes = [2, 1, 32], strides = [1, 1, 1]} : vector<2x8x32xf32> to vector<2x1x32xf32>
      %162 = vector.shape_cast %161 : vector<2x1x32xf32> to vector<2x32xf32>
      %163 = arith.truncf %162 : vector<2x32xf32> to vector<2x32xbf16>
      %c0_68 = arith.constant 0 : index
      %c0_69 = arith.constant 0 : index
      %164 = vector.load %arg6[%c0_68, %c0_69] : memref<32x32xbf16, #tpu.memory_space<vmem>>, vector<32x32xbf16>
      %cst_70 = arith.constant dense<0.000000e+00> : vector<2x32xf32>
      %165 = tpu.matmul %163, %164, %cst_70 {dimension_numbers = #tpu.dot_dimension_numbers<[1], [0], [0], [1], [0, 0, 1, 1], [], []>} : vector<2x32xbf16>, vector<32x32xbf16>, vector<2x32xf32> -> vector<2x32xf32>
      %c0_71 = arith.constant 0 : index
      %c0_72 = arith.constant 0 : index
      %166 = vector.load %arg7[%c0_71, %c0_72] : memref<1x32xf32, #tpu.memory_space<vmem>>, vector<1x32xf32>
      %167 = vector.broadcast %166 : vector<1x32xf32> to vector<2x32xf32>
      %168 = arith.addf %165, %167 : vector<2x32xf32>
      %169 = math.tanh %168 : vector<2x32xf32>
      %c0_73 = arith.constant 0 : index
      %c0_74 = arith.constant 0 : index
      %170 = vector.load %arg5[%c0_73, %c0_74] : memref<2x10xf32, #tpu.memory_space<vmem>>, vector<2x10xf32>
      %171 = arith.truncf %170 : vector<2x10xf32> to vector<2x10xbf16>
      %c0_75 = arith.constant 0 : index
      %c0_76 = arith.constant 0 : index
      %172 = vector.load %arg8[%c0_75, %c0_76] : memref<10x48xbf16, #tpu.memory_space<vmem>>, vector<10x48xbf16>
      %cst_77 = arith.constant dense<0.000000e+00> : vector<2x48xf32>
      %173 = tpu.matmul %171, %172, %cst_77 {dimension_numbers = #tpu.dot_dimension_numbers<[1], [0], [0], [1], [0, 0, 1, 1], [], []>} : vector<2x10xbf16>, vector<10x48xbf16>, vector<2x48xf32> -> vector<2x48xf32>
      %c0_78 = arith.constant 0 : index
      %c0_79 = arith.constant 0 : index
      %174 = vector.load %arg9[%c0_78, %c0_79] : memref<1x48xf32, #tpu.memory_space<vmem>>, vector<1x48xf32>
      %175 = vector.broadcast %174 : vector<1x48xf32> to vector<2x48xf32>
      %176 = arith.addf %173, %175 : vector<2x48xf32>
      %cst_80 = arith.constant 0.000000e+00 : f32
      %177 = vector.broadcast %cst_80 : f32 to vector<2x48xf32>
      %178 = arith.maximumf %176, %177 : vector<2x48xf32>
      %179 = arith.truncf %169 : vector<2x32xf32> to vector<2x32xbf16>
      %c0_81 = arith.constant 0 : index
      %c0_82 = arith.constant 0 : index
      %180 = vector.load %arg10[%c0_81, %c0_82] : memref<32x192xbf16, #tpu.memory_space<vmem>>, vector<32x192xbf16>
      %cst_83 = arith.constant dense<0.000000e+00> : vector<2x192xf32>
      %181 = tpu.matmul %179, %180, %cst_83 {dimension_numbers = #tpu.dot_dimension_numbers<[1], [0], [0], [1], [0, 0, 1, 1], [], []>} : vector<2x32xbf16>, vector<32x192xbf16>, vector<2x192xf32> -> vector<2x192xf32>
      %182 = arith.truncf %178 : vector<2x48xf32> to vector<2x48xbf16>
      %c0_84 = arith.constant 0 : index
      %c0_85 = arith.constant 0 : index
      %183 = vector.load %arg11[%c0_84, %c0_85] : memref<48x192xbf16, #tpu.memory_space<vmem>>, vector<48x192xbf16>
      %cst_86 = arith.constant dense<0.000000e+00> : vector<2x192xf32>
      %184 = tpu.matmul %182, %183, %cst_86 {dimension_numbers = #tpu.dot_dimension_numbers<[1], [0], [0], [1], [0, 0, 1, 1], [], []>} : vector<2x48xbf16>, vector<48x192xbf16>, vector<2x192xf32> -> vector<2x192xf32>
      %185 = arith.addf %181, %184 : vector<2x192xf32>
      %c0_87 = arith.constant 0 : index
      %c0_88 = arith.constant 0 : index
      %186 = vector.load %arg12[%c0_87, %c0_88] : memref<1x192xf32, #tpu.memory_space<vmem>>, vector<1x192xf32>
      %187 = vector.broadcast %186 : vector<1x192xf32> to vector<2x192xf32>
      %188 = arith.addf %185, %187 : vector<2x192xf32>
      %cst_89 = arith.constant 0.000000e+00 : f32
      %189 = vector.broadcast %cst_89 : f32 to vector<2x192xf32>
      %190 = arith.maximumf %188, %189 : vector<2x192xf32>
      %191 = arith.truncf %190 : vector<2x192xf32> to vector<2x192xbf16>
      %c0_90 = arith.constant 0 : index
      %c0_91 = arith.constant 0 : index
      %192 = vector.load %arg13[%c0_90, %c0_91] : memref<192x128xbf16, #tpu.memory_space<vmem>>, vector<192x128xbf16>
      %cst_92 = arith.constant dense<0.000000e+00> : vector<2x128xf32>
      %193 = tpu.matmul %191, %192, %cst_92 {dimension_numbers = #tpu.dot_dimension_numbers<[1], [0], [0], [1], [0, 0, 1, 1], [], []>} : vector<2x192xbf16>, vector<192x128xbf16>, vector<2x128xf32> -> vector<2x128xf32>
      %c0_93 = arith.constant 0 : index
      %c0_94 = arith.constant 0 : index
      %194 = vector.load %arg14[%c0_93, %c0_94] : memref<1x128xf32, #tpu.memory_space<vmem>>, vector<1x128xf32>
      %195 = vector.broadcast %194 : vector<1x128xf32> to vector<2x128xf32>
      %196 = arith.addf %193, %195 : vector<2x128xf32>
      %c0_95 = arith.constant 0 : index
      %c0_96 = arith.constant 0 : index
      %197 = vector.load %arg27[%c0_95, %c0_96] : memref<2x128xf32, #tpu.memory_space<vmem>>, vector<2x128xf32>
      tpu.vector_store %arg27[%c0_95, %c0_96], %196 {strides = array<i32>} : memref<2x128xf32, #tpu.memory_space<vmem>>, vector<2x128xf32>,
    } else {
    }
    return
  }
  func.func @transform_0(%arg0: i32) -> (i32, i32) {
    %c0_i32 = arith.constant 0 : i32
    %c0_i32_0 = arith.constant 0 : i32
    %c0_i32_1 = arith.constant 0 : i32
    return %c0_i32, %c0_i32_0 : i32, i32
  }
  func.func @transform_1(%arg0: i32) -> (i32, i32) {
    %c0_i32 = arith.constant 0 : i32
    %c0_i32_0 = arith.constant 0 : i32
    %c0_i32_1 = arith.constant 0 : i32
    return %c0_i32, %c0_i32_0 : i32, i32
  }
  func.func @transform_2(%arg0: i32) -> (i32, i32) {
    %c0_i32 = arith.constant 0 : i32
    %c0_i32_0 = arith.constant 0 : i32
    %c0_i32_1 = arith.constant 0 : i32
    return %c0_i32, %c0_i32_0 : i32, i32
  }
  func.func @transform_3(%arg0: i32) -> (i32, i32) {
    %c0_i32 = arith.constant 0 : i32
    %c0_i32_0 = arith.constant 0 : i32
    %c0_i32_1 = arith.constant 0 : i32
    return %c0_i32, %c0_i32_0 : i32, i32
  }
  func.func @transform_4(%arg0: i32) -> (i32, i32) {
    %c0_i32 = arith.constant 0 : i32
    %c0_i32_0 = arith.constant 0 : i32
    %c0_i32_1 = arith.constant 0 : i32
    return %c0_i32, %c0_i32_0 : i32, i32
  }
  func.func @transform_5(%arg0: i32) -> (i32, i32) {
    %c0_i32 = arith.constant 0 : i32
    %c0_i32_0 = arith.constant 0 : i32
    %c0_i32_1 = arith.constant 0 : i32
    return %c0_i32, %c0_i32_0 : i32, i32
  }
  func.func @transform_6(%arg0: i32) -> (i32, i32) {
    %c0_i32 = arith.constant 0 : i32
    %c0_i32_0 = arith.constant 0 : i32
    %c0_i32_1 = arith.constant 0 : i32
    return %c0_i32, %c0_i32_0 : i32, i32
  }
  func.func @transform_7(%arg0: i32) -> (i32, i32) {
    %c0_i32 = arith.constant 0 : i32
    %c0_i32_0 = arith.constant 0 : i32
    %c0_i32_1 = arith.constant 0 : i32
    return %c0_i32, %c0_i32_0 : i32, i32
  }
  func.func @transform_8(%arg0: i32) -> (i32, i32) {
    %c0_i32 = arith.constant 0 : i32
    %c0_i32_0 = arith.constant 0 : i32
    %c0_i32_1 = arith.constant 0 : i32
    return %c0_i32, %c0_i32_0 : i32, i32
  }
  func.func @transform_9(%arg0: i32) -> (i32, i32) {
    %c0_i32 = arith.constant 0 : i32
    %c0_i32_0 = arith.constant 0 : i32
    %c0_i32_1 = arith.constant 0 : i32
    return %c0_i32, %c0_i32_0 : i32, i32
  }
  func.func @transform_10(%arg0: i32) -> (i32, i32) {
    %c0_i32 = arith.constant 0 : i32
    %c0_i32_0 = arith.constant 0 : i32
    %c0_i32_1 = arith.constant 0 : i32
    return %c0_i32, %c0_i32_0 : i32, i32
  }
  func.func @transform_11(%arg0: i32) -> (i32, i32) {
    %c0_i32 = arith.constant 0 : i32
    %c0_i32_0 = arith.constant 0 : i32
    %c0_i32_1 = arith.constant 0 : i32
    return %c0_i32, %c0_i32_0 : i32, i32
  }
  func.func @transform_12(%arg0: i32) -> (i32, i32) {
    %c0_i32 = arith.constant 0 : i32
    %c0_i32_0 = arith.constant 0 : i32
    %c0_i32_1 = arith.constant 0 : i32
    return %c0_i32, %c0_i32_0 : i32, i32
  }
  func.func @transform_13(%arg0: i32) -> (i32, i32) {
    %c0_i32 = arith.constant 0 : i32
    %c0_i32_0 = arith.constant 0 : i32
    %c0_i32_1 = arith.constant 0 : i32
    return %c0_i32, %c0_i32_0 : i32, i32
  }
  func.func @transform_14(%arg0: i32) -> (i32, i32, i32) {
    %c0_i32 = arith.constant 0 : i32
    %c0_i32_0 = arith.constant 0 : i32
    %c0_i32_1 = arith.constant 0 : i32
    return %arg0, %c0_i32, %c0_i32_0 : i32, i32, i32
  }
  func.func @transform_15(%arg0: i32) -> (i32, i32, i32) {
    %c0_i32 = arith.constant 0 : i32
    %c0_i32_0 = arith.constant 0 : i32
    %c0_i32_1 = arith.constant 0 : i32
    return %arg0, %c0_i32, %c0_i32_0 : i32, i32, i32
  }
  func.func @transform_16(%arg0: i32) -> (i32, i32, i32) {
    %c0_i32 = arith.constant 0 : i32
    %c0_i32_0 = arith.constant 0 : i32
    %c0_i32_1 = arith.constant 0 : i32
    return %arg0, %c0_i32, %c0_i32_0 : i32, i32, i32
  }
  func.func @transform_17(%arg0: i32) -> (i32, i32, i32) {
    %c0_i32 = arith.constant 0 : i32
    %c0_i32_0 = arith.constant 0 : i32
    %c0_i32_1 = arith.constant 0 : i32
    return %arg0, %c0_i32, %c0_i32_0 : i32, i32, i32
  }
  func.func @transform_18(%arg0: i32) -> (i32, i32, i32) {
    %c0_i32 = arith.constant 0 : i32
    %c0_i32_0 = arith.constant 0 : i32
    %c0_i32_1 = arith.constant 0 : i32
    return %arg0, %c0_i32, %c0_i32_0 : i32, i32, i32
  }
  func.func @transform_19(%arg0: i32) -> (i32, i32, i32) {
    %c0_i32 = arith.constant 0 : i32
    %c0_i32_0 = arith.constant 0 : i32
    %c0_i32_1 = arith.constant 0 : i32
    return %arg0, %c0_i32, %c0_i32_0 : i32, i32, i32
  }
  func.func @transform_20(%arg0: i32) -> (i32, i32, i32) {
    %c0_i32 = arith.constant 0 : i32
    %c0_i32_0 = arith.constant 0 : i32
    %c0_i32_1 = arith.constant 0 : i32
    return %arg0, %c0_i32, %c0_i32_0 : i32, i32, i32
  }
  func.func @transform_21(%arg0: i32) -> (i32, i32, i32) {
    %c0_i32 = arith.constant 0 : i32
    %c0_i32_0 = arith.constant 0 : i32
    %c0_i32_1 = arith.constant 0 : i32
    return %arg0, %c0_i32, %c0_i32_0 : i32, i32, i32
  }
  func.func @transform_22(%arg0: i32) -> (i32, i32, i32) {
    %c0_i32 = arith.constant 0 : i32
    %c0_i32_0 = arith.constant 0 : i32
    %c0_i32_1 = arith.constant 0 : i32
    return %arg0, %c0_i32, %c0_i32_0 : i32, i32, i32
  }
  func.func @transform_23(%arg0: i32) -> (i32, i32, i32) {
    %c0_i32 = arith.constant 0 : i32
    %c0_i32_0 = arith.constant 0 : i32
    %c0_i32_1 = arith.constant 0 : i32
    return %arg0, %c0_i32, %c0_i32_0 : i32, i32, i32
  }
  func.func @transform_24(%arg0: i32) -> (i32, i32, i32) {
    %c0_i32 = arith.constant 0 : i32
    %c0_i32_0 = arith.constant 0 : i32
    %c0_i32_1 = arith.constant 0 : i32
    return %arg0, %c0_i32, %c0_i32_0 : i32, i32, i32
  }
  func.func @transform_25(%arg0: i32) -> (i32, i32, i32) {
    %c0_i32 = arith.constant 0 : i32
    %c0_i32_0 = arith.constant 0 : i32
    %c0_i32_1 = arith.constant 0 : i32
    return %arg0, %c0_i32, %c0_i32_0 : i32, i32, i32
  }
  func.func @transform_26(%arg0: i32) -> (i32, i32) {
    %c0_i32 = arith.constant 0 : i32
    %c0_i32_0 = arith.constant 0 : i32
    %c0_i32_1 = arith.constant 0 : i32
    return %c0_i32, %c0_i32_0 : i32, i32
  }
}

</mosaic_0001>

<llo_original>
// kernel: pubmedbert_classifier_forward.1
$region0: #{pubmedbert_classifier_forward.1}
  #allocation0 [shape = 'u32[]', space=smem, size = 0x4, offset = 0x4, fixed_abs, tag = 'smem constant byte address 0x4 - core index']
  #allocation1 [shape = 'u32[144,128]{1,0:T(1,128)}', space=vmem, size = 0x12000, scoped, tag = 'internal scratch']
  #allocation2 [shape = 'f32[16,32]{1,0:T(8,128)}', space=vmem, size = 0x2000, scoped, tag = 'scratch operand']
  #allocation3 [shape = 'f32[2,8]{1,0:T(2,128)}', space=vmem, size = 0x400, scoped, tag = 'scratch operand']
  %s0 = inlined_call_operand.vmem [shape: f32[16,32], index: 0, kind: input, shape index: {}]
  %s1 = inlined_call_operand.vmem [shape: f32[2,8], index: 1, kind: input, shape index: {}]
  %s2 = inlined_call_operand.vmem [shape: f32[1,32], index: 2, kind: input, shape index: {}]
  %s3 = inlined_call_operand.vmem [shape: f32[1,32], index: 3, kind: input, shape index: {}]
  %s4 = inlined_call_operand.vmem [shape: f32[2,10], index: 4, kind: input, shape index: {}]
  %s5 = inlined_call_operand.vmem [shape: bf16[32,32], index: 5, kind: input, shape index: {}]
  %s6 = inlined_call_operand.vmem [shape: f32[1,32], index: 6, kind: input, shape index: {}]
  %s7 = inlined_call_operand.vmem [shape: bf16[10,48], index: 7, kind: input, shape index: {}]
  %s8 = inlined_call_operand.vmem [shape: f32[1,48], index: 8, kind: input, shape index: {}]
  %s9 = inlined_call_operand.vmem [shape: bf16[32,192], index: 9, kind: input, shape index: {}]
  %s10 = inlined_call_operand.vmem [shape: bf16[48,192], index: 10, kind: input, shape index: {}]
  %s11 = inlined_call_operand.vmem [shape: f32[1,192], index: 11, kind: input, shape index: {}]
  %s12 = inlined_call_operand.vmem [shape: bf16[192,128], index: 12, kind: input, shape index: {}]
  %s13 = inlined_call_operand.vmem [shape: f32[1,128], index: 13, kind: input, shape index: {}]
  %s14 = inlined_call_operand.vmem [shape: bf16[2,32,96], index: 14, kind: input, shape index: {}]
  %s15 = inlined_call_operand.vmem [shape: f32[2,1,96], index: 15, kind: input, shape index: {}]
  %s16 = inlined_call_operand.vmem [shape: bf16[2,32,32], index: 16, kind: input, shape index: {}]
  %s17 = inlined_call_operand.vmem [shape: f32[2,1,32], index: 17, kind: input, shape index: {}]
  %s18 = inlined_call_operand.vmem [shape: f32[2,1,32], index: 18, kind: input, shape index: {}]
  %s19 = inlined_call_operand.vmem [shape: f32[2,1,32], index: 19, kind: input, shape index: {}]
  %s20 = inlined_call_operand.vmem [shape: bf16[2,32,64], index: 20, kind: input, shape index: {}]
  %s21 = inlined_call_operand.vmem [shape: f32[2,1,64], index: 21, kind: input, shape index: {}]
  %s22 = inlined_call_operand.vmem [shape: bf16[2,64,32], index: 22, kind: input, shape index: {}]
  %s23 = inlined_call_operand.vmem [shape: f32[2,1,32], index: 23, kind: input, shape index: {}]
  %s24 = inlined_call_operand.vmem [shape: f32[2,1,32], index: 24, kind: input, shape index: {}]
  %s25 = inlined_call_operand.vmem [shape: f32[2,1,32], index: 25, kind: input, shape index: {}]
  %s26 = inlined_call_operand.hbm [shape: f32[2,128], index: 26, kind: output, shape index: {}]
  %s27 = sld [smem:[#allocation0]]
  $region145: #{pubmedbert_classifier_forward.1} parent=0
    _
  %s29 = ssub.s32 1, %s27
  %s30 = scalar_select 0, %s29, %s27
  $region1: #{pubmedbert_classifier_forward.1} parent=0
    #allocation4 [shape = 'u8[1024]{0}', space=vmem, size = 0x400, scoped, tag = 'output window, operand 0, single buffered']
    #allocation5 [shape = 's32[2]{0}', space=sflag, size = 0x8, scoped, tag = 'scoped memory for pubmedbert_classifier_forward.1']
    %31 = vsyncpa [#allocation5], 0
    loop: start=0, step=1, limit=4
    $region2: #{pubmedbert_classifier_forward.1} parent=1 // loop_pre_header
      _
    $region3: #{pubmedbert_classifier_forward.1} parent=1 // loop_header
      %s33 = sphi 0, %s37
      %p34 = scmp.ge.s32.totalorder %s33, 4
      %s41 = sphi 0, %s41
      %s43 = sphi 0, %s41
      %s44 = sphi 0, %s43
      %s58 = sphi 0, %s44
      %s62 = sphi 0, %s62
      %s64 = sphi 0, %s62
      %s65 = sphi 0, %s64
      %s79 = sphi 0, %s65
      %s83 = sphi 0, %s83
      %s85 = sphi 0, %s83
      %s86 = sphi 0, %s85
      %s100 = sphi 0, %s86
      %s104 = sphi 0, %s104
      %s106 = sphi 0, %s104
      %s107 = sphi 0, %s106
      %s121 = sphi 0, %s107
      %s125 = sphi 0, %s125
      %s127 = sphi 0, %s125
      %s128 = sphi 0, %s127
      %s142 = sphi 0, %s128
      %s146 = sphi 0, %s146
      %s148 = sphi 0, %s146
      %s149 = sphi 0, %s148
      %s163 = sphi 0, %s149
      %s167 = sphi 0, %s167
      %s169 = sphi 0, %s167
      %s170 = sphi 0, %s169
      %s184 = sphi 0, %s170
      %s188 = sphi 0, %s188
      %s190 = sphi 0, %s188
      %s191 = sphi 0, %s190
      %s205 = sphi 0, %s191
      %s209 = sphi 0, %s209
      %s211 = sphi 0, %s209
      %s212 = sphi 0, %s211
      %s226 = sphi 0, %s212
      %s230 = sphi 0, %s230
      %s232 = sphi 0, %s230
      %s233 = sphi 0, %s232
      %s247 = sphi 0, %s233
      %s251 = sphi 0, %s251
      %s253 = sphi 0, %s251
      %s254 = sphi 0, %s253
      %s268 = sphi 0, %s254
      %s272 = sphi 0, %s272
      %s274 = sphi 0, %s272
      %s275 = sphi 0, %s274
      %s289 = sphi 0, %s275
      %s293 = sphi 0, %s293
      %s295 = sphi 0, %s293
      %s296 = sphi 0, %s295
      %s310 = sphi 0, %s296
      %s314 = sphi 0, %s314
      %s316 = sphi 0, %s314
      %s317 = sphi 0, %s316
      %s331 = sphi 0, %s317
      %s337 = sphi 0, %s339
      %s340 = sphi 0, %s337
      %s341 = sphi 0, %s340
      %s357 = sphi 0, %s341
      %s363 = sphi 0, %s365
      %s366 = sphi 0, %s363
      %s367 = sphi 0, %s366
      %s383 = sphi 0, %s367
      %s389 = sphi 0, %s391
      %s392 = sphi 0, %s389
      %s393 = sphi 0, %s392
      %s409 = sphi 0, %s393
      %s415 = sphi 0, %s417
      %s418 = sphi 0, %s415
      %s419 = sphi 0, %s418
      %s435 = sphi 0, %s419
      %s441 = sphi 0, %s443
      %s444 = sphi 0, %s441
      %s445 = sphi 0, %s444
      %s461 = sphi 0, %s445
      %s467 = sphi 0, %s469
      %s470 = sphi 0, %s467
      %s471 = sphi 0, %s470
      %s487 = sphi 0, %s471
      %s493 = sphi 0, %s495
      %s496 = sphi 0, %s493
      %s497 = sphi 0, %s496
      %s513 = sphi 0, %s497
      %s519 = sphi 0, %s521
      %s522 = sphi 0, %s519
      %s523 = sphi 0, %s522
      %s539 = sphi 0, %s523
      %s545 = sphi 0, %s547
      %s548 = sphi 0, %s545
      %s549 = sphi 0, %s548
      %s565 = sphi 0, %s549
      %s571 = sphi 0, %s573
      %s574 = sphi 0, %s571
      %s575 = sphi 0, %s574
      %s591 = sphi 0, %s575
      %s597 = sphi 0, %s599
      %s600 = sphi 0, %s597
      %s601 = sphi 0, %s600
      %s617 = sphi 0, %s601
      %s623 = sphi 0, %s625
      %s626 = sphi 0, %s623
      %s627 = sphi 0, %s626
      %s643 = sphi 0, %s627
      %s647 = sphi 0, %s647
      %s649 = sphi 0, %s647
      %s650 = sphi 0, %s649
      %s664 = sphi 0, %s650
    $region4: #{pubmedbert_classifier_forward.1} parent=1 // loop_header_branch
      %36 = sbr.rel (%p34) target = $region8
    $region5: #{pubmedbert_classifier_forward.1} parent=1 // loop_body
      %s38 = ssub.s32 %s33, 1
      %s39 = ssub.s32 %s33, 2
      %s40 = sadd.s32 %s33, 1
      %s42 = sadd.s32 %s41, 1
      %p45 = scmp.eq.s32.totalorder %s33, 1
      %p46 = scmp.ne.s32.totalorder %s41, %s43
      %p47 = scmp.eq.s32.totalorder %s33, 0
      %p48 = por %p46, %p47
      %p49 = scmp.ne.s32.totalorder %s41, %s43
      %p50 = scmp.eq.s32.totalorder %s38, 1
      %p51 = por %p49, %p50
      %p52 = scmp.ne.s32.totalorder %s43, %s44
      %p53 = scmp.eq.s32.totalorder %s38, 0
      %p54 = por %p52, %p53
      %p55 = scmp.ne.s32.totalorder %s43, %s44
      %p56 = scmp.eq.s32.totalorder %s39, 1
      %p57 = por %p55, %p56
      %p59 = scmp.ne.s32.totalorder %s44, %s58
      %p60 = scmp.eq.s32.totalorder %s39, 0
      %p61 = por %p59, %p60
      %s63 = sadd.s32 %s62, 1
      %p66 = scmp.eq.s32.totalorder %s33, 1
      %p67 = scmp.ne.s32.totalorder %s62, %s64
      %p68 = scmp.eq.s32.totalorder %s33, 0
      %p69 = por %p67, %p68
      %p70 = scmp.ne.s32.totalorder %s62, %s64
      %p71 = scmp.eq.s32.totalorder %s38, 1
      %p72 = por %p70, %p71
      %p73 = scmp.ne.s32.totalorder %s64, %s65
      %p74 = scmp.eq.s32.totalorder %s38, 0
      %p75 = por %p73, %p74
      %p76 = scmp.ne.s32.totalorder %s64, %s65
      %p77 = scmp.eq.s32.totalorder %s39, 1
      %p78 = por %p76, %p77
      %p80 = scmp.ne.s32.totalorder %s65, %s79
      %p81 = scmp.eq.s32.totalorder %s39, 0
      %p82 = por %p80, %p81
      %s84 = sadd.s32 %s83, 1
      %p87 = scmp.eq.s32.totalorder %s33, 1
      %p88 = scmp.ne.s32.totalorder %s83, %s85
      %p89 = scmp.eq.s32.totalorder %s33, 0
      %p90 = por %p88, %p89
      %p91 = scmp.ne.s32.totalorder %s83, %s85
      %p92 = scmp.eq.s32.totalorder %s38, 1
      %p93 = por %p91, %p92
      %p94 = scmp.ne.s32.totalorder %s85, %s86
      %p95 = scmp.eq.s32.totalorder %s38, 0
      %p96 = por %p94, %p95
      %p97 = scmp.ne.s32.totalorder %s85, %s86
      %p98 = scmp.eq.s32.totalorder %s39, 1
      %p99 = por %p97, %p98
      %p101 = scmp.ne.s32.totalorder %s86, %s100
      %p102 = scmp.eq.s32.totalorder %s39, 0
      %p103 = por %p101, %p102
      %s105 = sadd.s32 %s104, 1
      %p108 = scmp.eq.s32.totalorder %s33, 1
      %p109 = scmp.ne.s32.totalorder %s104, %s106
      %p110 = scmp.eq.s32.totalorder %s33, 0
      %p111 = por %p109, %p110
      %p112 = scmp.ne.s32.totalorder %s104, %s106
      %p113 = scmp.eq.s32.totalorder %s38, 1
      %p114 = por %p112, %p113
      %p115 = scmp.ne.s32.totalorder %s106, %s107
      %p116 = scmp.eq.s32.totalorder %s38, 0
      %p117 = por %p115, %p116
      %p118 = scmp.ne.s32.totalorder %s106, %s107
      %p119 = scmp.eq.s32.totalorder %s39, 1
      %p120 = por %p118, %p119
      %p122 = scmp.ne.s32.totalorder %s107, %s121
      %p123 = scmp.eq.s32.totalorder %s39, 0
      %p124 = por %p122, %p123
      %s126 = sadd.s32 %s125, 1
      %p129 = scmp.eq.s32.totalorder %s33, 1
      %p130 = scmp.ne.s32.totalorder %s125, %s127
      %p131 = scmp.eq.s32.totalorder %s33, 0
      %p132 = por %p130, %p131
      %p133 = scmp.ne.s32.totalorder %s125, %s127
      %p134 = scmp.eq.s32.totalorder %s38, 1
      %p135 = por %p133, %p134
      %p136 = scmp.ne.s32.totalorder %s127, %s128
      %p137 = scmp.eq.s32.totalorder %s38, 0
      %p138 = por %p136, %p137
      %p139 = scmp.ne.s32.totalorder %s127, %s128
      %p140 = scmp.eq.s32.totalorder %s39, 1
      %p141 = por %p139, %p140
      %p143 = scmp.ne.s32.totalorder %s128, %s142
      %p144 = scmp.eq.s32.totalorder %s39, 0
      %p145 = por %p143, %p144
      %s147 = sadd.s32 %s146, 1
      %p150 = scmp.eq.s32.totalorder %s33, 1
      %p151 = scmp.ne.s32.totalorder %s146, %s148
      %p152 = scmp.eq.s32.totalorder %s33, 0
      %p153 = por %p151, %p152
      %p154 = scmp.ne.s32.totalorder %s146, %s148
      %p155 = scmp.eq.s32.totalorder %s38, 1
      %p156 = por %p154, %p155
      %p157 = scmp.ne.s32.totalorder %s148, %s149
      %p158 = scmp.eq.s32.totalorder %s38, 0
      %p159 = por %p157, %p158
      %p160 = scmp.ne.s32.totalorder %s148, %s149
      %p161 = scmp.eq.s32.totalorder %s39, 1
      %p162 = por %p160, %p161
      %p164 = scmp.ne.s32.totalorder %s149, %s163
      %p165 = scmp.eq.s32.totalorder %s39, 0
      %p166 = por %p164, %p165
      %s168 = sadd.s32 %s167, 1
      %p171 = scmp.eq.s32.totalorder %s33, 1
      %p172 = scmp.ne.s32.totalorder %s167, %s169
      %p173 = scmp.eq.s32.totalorder %s33, 0
      %p174 = por %p172, %p173
      %p175 = scmp.ne.s32.totalorder %s167, %s169
      %p176 = scmp.eq.s32.totalorder %s38, 1
      %p177 = por %p175, %p176
      %p178 = scmp.ne.s32.totalorder %s169, %s170
      %p179 = scmp.eq.s32.totalorder %s38, 0
      %p180 = por %p178, %p179
      %p181 = scmp.ne.s32.totalorder %s169, %s170
      %p182 = scmp.eq.s32.totalorder %s39, 1
      %p183 = por %p181, %p182
      %p185 = scmp.ne.s32.totalorder %s170, %s184
      %p186 = scmp.eq.s32.totalorder %s39, 0
      %p187 = por %p185, %p186
      %s189 = sadd.s32 %s188, 1
      %p192 = scmp.eq.s32.totalorder %s33, 1
      %p193 = scmp.ne.s32.totalorder %s188, %s190
      %p194 = scmp.eq.s32.totalorder %s33, 0
      %p195 = por %p193, %p194
      %p196 = scmp.ne.s32.totalorder %s188, %s190
      %p197 = scmp.eq.s32.totalorder %s38, 1
      %p198 = por %p196, %p197
      %p199 = scmp.ne.s32.totalorder %s190, %s191
      %p200 = scmp.eq.s32.totalorder %s38, 0
      %p201 = por %p199, %p200
      %p202 = scmp.ne.s32.totalorder %s190, %s191
      %p203 = scmp.eq.s32.totalorder %s39, 1
      %p204 = por %p202, %p203
      %p206 = scmp.ne.s32.totalorder %s191, %s205
      %p207 = scmp.eq.s32.totalorder %s39, 0
      %p208 = por %p206, %p207
      %s210 = sadd.s32 %s209, 1
      %p213 = scmp.eq.s32.totalorder %s33, 1
      %p214 = scmp.ne.s32.totalorder %s209, %s211
      %p215 = scmp.eq.s32.totalorder %s33, 0
      %p216 = por %p214, %p215
      %p217 = scmp.ne.s32.totalorder %s209, %s211
      %p218 = scmp.eq.s32.totalorder %s38, 1
      %p219 = por %p217, %p218
      %p220 = scmp.ne.s32.totalorder %s211, %s212
      %p221 = scmp.eq.s32.totalorder %s38, 0
      %p222 = por %p220, %p221
      %p223 = scmp.ne.s32.totalorder %s211, %s212
      %p224 = scmp.eq.s32.totalorder %s39, 1
      %p225 = por %p223, %p224
      %p227 = scmp.ne.s32.totalorder %s212, %s226
      %p228 = scmp.eq.s32.totalorder %s39, 0
      %p229 = por %p227, %p228
      %s231 = sadd.s32 %s230, 1
      %p234 = scmp.eq.s32.totalorder %s33, 1
      %p235 = scmp.ne.s32.totalorder %s230, %s232
      %p236 = scmp.eq.s32.totalorder %s33, 0
      %p237 = por %p235, %p236
      %p238 = scmp.ne.s32.totalorder %s230, %s232
      %p239 = scmp.eq.s32.totalorder %s38, 1
      %p240 = por %p238, %p239
      %p241 = scmp.ne.s32.totalorder %s232, %s233
      %p242 = scmp.eq.s32.totalorder %s38, 0
      %p243 = por %p241, %p242
      %p244 = scmp.ne.s32.totalorder %s232, %s233
      %p245 = scmp.eq.s32.totalorder %s39, 1
      %p246 = por %p244, %p245
      %p248 = scmp.ne.s32.totalorder %s233, %s247
      %p249 = scmp.eq.s32.totalorder %s39, 0
      %p250 = por %p248, %p249
      %s252 = sadd.s32 %s251, 1
      %p255 = scmp.eq.s32.totalorder %s33, 1
      %p256 = scmp.ne.s32.totalorder %s251, %s253
      %p257 = scmp.eq.s32.totalorder %s33, 0
      %p258 = por %p256, %p257
      %p259 = scmp.ne.s32.totalorder %s251, %s253
      %p260 = scmp.eq.s32.totalorder %s38, 1
      %p261 = por %p259, %p260
      %p262 = scmp.ne.s32.totalorder %s253, %s254
      %p263 = scmp.eq.s32.totalorder %s38, 0
      %p264 = por %p262, %p263
      %p265 = scmp.ne.s32.totalorder %s253, %s254
      %p266 = scmp.eq.s32.totalorder %s39, 1
      %p267 = por %p265, %p266
      %p269 = scmp.ne.s32.totalorder %s254, %s268
      %p270 = scmp.eq.s32.totalorder %s39, 0
      %p271 = por %p269, %p270
      %s273 = sadd.s32 %s272, 1
      %p276 = scmp.eq.s32.totalorder %s33, 1
      %p277 = scmp.ne.s32.totalorder %s272, %s274
      %p278 = scmp.eq.s32.totalorder %s33, 0
      %p279 = por %p277, %p278
      %p280 = scmp.ne.s32.totalorder %s272, %s274
      %p281 = scmp.eq.s32.totalorder %s38, 1
      %p282 = por %p280, %p281
      %p283 = scmp.ne.s32.totalorder %s274, %s275
      %p284 = scmp.eq.s32.totalorder %s38, 0
      %p285 = por %p283, %p284
      %p286 = scmp.ne.s32.totalorder %s274, %s275
      %p287 = scmp.eq.s32.totalorder %s39, 1
      %p288 = por %p286, %p287
      %p290 = scmp.ne.s32.totalorder %s275, %s289
      %p291 = scmp.eq.s32.totalorder %s39, 0
      %p292 = por %p290, %p291
      %s294 = sadd.s32 %s293, 1
      %p297 = scmp.eq.s32.totalorder %s33, 1
      %p298 = scmp.ne.s32.totalorder %s293, %s295
      %p299 = scmp.eq.s32.totalorder %s33, 0
      %p300 = por %p298, %p299
      %p301 = scmp.ne.s32.totalorder %s293, %s295
      %p302 = scmp.eq.s32.totalorder %s38, 1
      %p303 = por %p301, %p302
      %p304 = scmp.ne.s32.totalorder %s295, %s296
      %p305 = scmp.eq.s32.totalorder %s38, 0
      %p306 = por %p304, %p305
      %p307 = scmp.ne.s32.totalorder %s295, %s296
      %p308 = scmp.eq.s32.totalorder %s39, 1
      %p309 = por %p307, %p308
      %p311 = scmp.ne.s32.totalorder %s296, %s310
      %p312 = scmp.eq.s32.totalorder %s39, 0
      %p313 = por %p311, %p312
      %s315 = sadd.s32 %s314, 1
      %p318 = scmp.eq.s32.totalorder %s33, 1
      %p319 = scmp.ne.s32.totalorder %s314, %s316
      %p320 = scmp.eq.s32.totalorder %s33, 0
      %p321 = por %p319, %p320
      %p322 = scmp.ne.s32.totalorder %s314, %s316
      %p323 = scmp.eq.s32.totalorder %s38, 1
      %p324 = por %p322, %p323
      %p325 = scmp.ne.s32.totalorder %s316, %s317
      %p326 = scmp.eq.s32.totalorder %s38, 0
      %p327 = por %p325, %p326
      %p328 = scmp.ne.s32.totalorder %s316, %s317
      %p329 = scmp.eq.s32.totalorder %s39, 1
      %p330 = por %p328, %p329
      %p332 = scmp.ne.s32.totalorder %s317, %s331
      %p333 = scmp.eq.s32.totalorder %s39, 0
      %p334 = por %p332, %p333
      %s335 = ssub.s32 %s33, %s40
      %p336 = scmp.eq.s32.totalorder %s335, 0
      %s338 = sadd.s32 %s337, 1
      %s339 = scalar_select %p336, %s337, %s338
      %p342 = pneg %p336
      %p343 = scmp.eq.s32.totalorder %s33, 1
      %p344 = por %p342, %p343
      %p345 = scmp.ne.s32.totalorder %s337, %s340
      %p346 = scmp.eq.s32.totalorder %s33, 0
      %p347 = por %p345, %p346
      %p348 = scmp.ne.s32.totalorder %s337, %s340
      %p349 = scmp.eq.s32.totalorder %s38, 1
      %p350 = por %p348, %p349
      %p351 = scmp.ne.s32.totalorder %s340, %s341
      %p352 = scmp.eq.s32.totalorder %s38, 0
      %p353 = por %p351, %p352
      %p354 = scmp.ne.s32.totalorder %s340, %s341
      %p355 = scmp.eq.s32.totalorder %s39, 1
      %p356 = por %p354, %p355
      %p358 = scmp.ne.s32.totalorder %s341, %s357
      %p359 = scmp.eq.s32.totalorder %s39, 0
      %p360 = por %p358, %p359
      %s361 = ssub.s32 %s33, %s40
      %p362 = scmp.eq.s32.totalorder %s361, 0
      %s364 = sadd.s32 %s363, 1
      %s365 = scalar_select %p362, %s363, %s364
      %p368 = pneg %p362
      %p369 = scmp.eq.s32.totalorder %s33, 1
      %p370 = por %p368, %p369
      %p371 = scmp.ne.s32.totalorder %s363, %s366
      %p372 = scmp.eq.s32.totalorder %s33, 0
      %p373 = por %p371, %p372
      %p374 = scmp.ne.s32.totalorder %s363, %s366
      %p375 = scmp.eq.s32.totalorder %s38, 1
      %p376 = por %p374, %p375
      %p377 = scmp.ne.s32.totalorder %s366, %s367
      %p378 = scmp.eq.s32.totalorder %s38, 0
      %p379 = por %p377, %p378
      %p380 = scmp.ne.s32.totalorder %s366, %s367
      %p381 = scmp.eq.s32.totalorder %s39, 1
      %p382 = por %p380, %p381
      %p384 = scmp.ne.s32.totalorder %s367, %s383
      %p385 = scmp.eq.s32.totalorder %s39, 0
      %p386 = por %p384, %p385
      %s387 = ssub.s32 %s33, %s40
      %p388 = scmp.eq.s32.totalorder %s387, 0
      %s390 = sadd.s32 %s389, 1
      %s391 = scalar_select %p388, %s389, %s390
      %p394 = pneg %p388
      %p395 = scmp.eq.s32.totalorder %s33, 1
      %p396 = por %p394, %p395
      %p397 = scmp.ne.s32.totalorder %s389, %s392
      %p398 = scmp.eq.s32.totalorder %s33, 0
      %p399 = por %p397, %p398
      %p400 = scmp.ne.s32.totalorder %s389, %s392
      %p401 = scmp.eq.s32.totalorder %s38, 1
      %p402 = por %p400, %p401
      %p403 = scmp.ne.s32.totalorder %s392, %s393
      %p404 = scmp.eq.s32.totalorder %s38, 0
      %p405 = por %p403, %p404
      %p406 = scmp.ne.s32.totalorder %s392, %s393
      %p407 = scmp.eq.s32.totalorder %s39, 1
      %p408 = por %p406, %p407
      %p410 = scmp.ne.s32.totalorder %s393, %s409
      %p411 = scmp.eq.s32.totalorder %s39, 0
      %p412 = por %p410, %p411
      %s413 = ssub.s32 %s33, %s40
      %p414 = scmp.eq.s32.totalorder %s413, 0
      %s416 = sadd.s32 %s415, 1
      %s417 = scalar_select %p414, %s415, %s416
      %p420 = pneg %p414
      %p421 = scmp.eq.s32.totalorder %s33, 1
      %p422 = por %p420, %p421
      %p423 = scmp.ne.s32.totalorder %s415, %s418
      %p424 = scmp.eq.s32.totalorder %s33, 0
      %p425 = por %p423, %p424
      %p426 = scmp.ne.s32.totalorder %s415, %s418
      %p427 = scmp.eq.s32.totalorder %s38, 1
      %p428 = por %p426, %p427
      %p429 = scmp.ne.s32.totalorder %s418, %s419
      %p430 = scmp.eq.s32.totalorder %s38, 0
      %p431 = por %p429, %p430
      %p432 = scmp.ne.s32.totalorder %s418, %s419
      %p433 = scmp.eq.s32.totalorder %s39, 1
      %p434 = por %p432, %p433
      %p436 = scmp.ne.s32.totalorder %s419, %s435
      %p437 = scmp.eq.s32.totalorder %s39, 0
      %p438 = por %p436, %p437
      %s439 = ssub.s32 %s33, %s40
      %p440 = scmp.eq.s32.totalorder %s439, 0
      %s442 = sadd.s32 %s441, 1
      %s443 = scalar_select %p440, %s441, %s442
      %p446 = pneg %p440
      %p447 = scmp.eq.s32.totalorder %s33, 1
      %p448 = por %p446, %p447
      %p449 = scmp.ne.s32.totalorder %s441, %s444
      %p450 = scmp.eq.s32.totalorder %s33, 0
      %p451 = por %p449, %p450
      %p452 = scmp.ne.s32.totalorder %s441, %s444
      %p453 = scmp.eq.s32.totalorder %s38, 1
      %p454 = por %p452, %p453
      %p455 = scmp.ne.s32.totalorder %s444, %s445
      %p456 = scmp.eq.s32.totalorder %s38, 0
      %p457 = por %p455, %p456
      %p458 = scmp.ne.s32.totalorder %s444, %s445
      %p459 = scmp.eq.s32.totalorder %s39, 1
      %p460 = por %p458, %p459
      %p462 = scmp.ne.s32.totalorder %s445, %s461
      %p463 = scmp.eq.s32.totalorder %s39, 0
      %p464 = por %p462, %p463
      %s465 = ssub.s32 %s33, %s40
      %p466 = scmp.eq.s32.totalorder %s465, 0
      %s468 = sadd.s32 %s467, 1
      %s469 = scalar_select %p466, %s467, %s468
      %p472 = pneg %p466
      %p473 = scmp.eq.s32.totalorder %s33, 1
      %p474 = por %p472, %p473
      %p475 = scmp.ne.s32.totalorder %s467, %s470
      %p476 = scmp.eq.s32.totalorder %s33, 0
      %p477 = por %p475, %p476
      %p478 = scmp.ne.s32.totalorder %s467, %s470
      %p479 = scmp.eq.s32.totalorder %s38, 1
      %p480 = por %p478, %p479
      %p481 = scmp.ne.s32.totalorder %s470, %s471
      %p482 = scmp.eq.s32.totalorder %s38, 0
      %p483 = por %p481, %p482
      %p484 = scmp.ne.s32.totalorder %s470, %s471
      %p485 = scmp.eq.s32.totalorder %s39, 1
      %p486 = por %p484, %p485
      %p488 = scmp.ne.s32.totalorder %s471, %s487
      %p489 = scmp.eq.s32.totalorder %s39, 0
      %p490 = por %p488, %p489
      %s491 = ssub.s32 %s33, %s40
      %p492 = scmp.eq.s32.totalorder %s491, 0
      %s494 = sadd.s32 %s493, 1
      %s495 = scalar_select %p492, %s493, %s494
      %p498 = pneg %p492
      %p499 = scmp.eq.s32.totalorder %s33, 1
      %p500 = por %p498, %p499
      %p501 = scmp.ne.s32.totalorder %s493, %s496
      %p502 = scmp.eq.s32.totalorder %s33, 0
      %p503 = por %p501, %p502
      %p504 = scmp.ne.s32.totalorder %s493, %s496
      %p505 = scmp.eq.s32.totalorder %s38, 1
      %p506 = por %p504, %p505
      %p507 = scmp.ne.s32.totalorder %s496, %s497
      %p508 = scmp.eq.s32.totalorder %s38, 0
      %p509 = por %p507, %p508
      %p510 = scmp.ne.s32.totalorder %s496, %s497
      %p511 = scmp.eq.s32.totalorder %s39, 1
      %p512 = por %p510, %p511
      %p514 = scmp.ne.s32.totalorder %s497, %s513
      %p515 = scmp.eq.s32.totalorder %s39, 0
      %p516 = por %p514, %p515
      %s517 = ssub.s32 %s33, %s40
      %p518 = scmp.eq.s32.totalorder %s517, 0
      %s520 = sadd.s32 %s519, 1
      %s521 = scalar_select %p518, %s519, %s520
      %p524 = pneg %p518
      %p525 = scmp.eq.s32.totalorder %s33, 1
      %p526 = por %p524, %p525
      %p527 = scmp.ne.s32.totalorder %s519, %s522
      %p528 = scmp.eq.s32.totalorder %s33, 0
      %p529 = por %p527, %p528
      %p530 = scmp.ne.s32.totalorder %s519, %s522
      %p531 = scmp.eq.s32.totalorder %s38, 1
      %p532 = por %p530, %p531
      %p533 = scmp.ne.s32.totalorder %s522, %s523
      %p534 = scmp.eq.s32.totalorder %s38, 0
      %p535 = por %p533, %p534
      %p536 = scmp.ne.s32.totalorder %s522, %s523
      %p537 = scmp.eq.s32.totalorder %s39, 1
      %p538 = por %p536, %p537
      %p540 = scmp.ne.s32.totalorder %s523, %s539
      %p541 = scmp.eq.s32.totalorder %s39, 0
      %p542 = por %p540, %p541
      %s543 = ssub.s32 %s33, %s40
      %p544 = scmp.eq.s32.totalorder %s543, 0
      %s546 = sadd.s32 %s545, 1
      %s547 = scalar_select %p544, %s545, %s546
      %p550 = pneg %p544
      %p551 = scmp.eq.s32.totalorder %s33, 1
      %p552 = por %p550, %p551
      %p553 = scmp.ne.s32.totalorder %s545, %s548
      %p554 = scmp.eq.s32.totalorder %s33, 0
      %p555 = por %p553, %p554
      %p556 = scmp.ne.s32.totalorder %s545, %s548
      %p557 = scmp.eq.s32.totalorder %s38, 1
      %p558 = por %p556, %p557
      %p559 = scmp.ne.s32.totalorder %s548, %s549
      %p560 = scmp.eq.s32.totalorder %s38, 0
      %p561 = por %p559, %p560
      %p562 = scmp.ne.s32.totalorder %s548, %s549
      %p563 = scmp.eq.s32.totalorder %s39, 1
      %p564 = por %p562, %p563
      %p566 = scmp.ne.s32.totalorder %s549, %s565
      %p567 = scmp.eq.s32.totalorder %s39, 0
      %p568 = por %p566, %p567
      %s569 = ssub.s32 %s33, %s40
      %p570 = scmp.eq.s32.totalorder %s569, 0
      %s572 = sadd.s32 %s571, 1
      %s573 = scalar_select %p570, %s571, %s572
      %p576 = pneg %p570
      %p577 = scmp.eq.s32.totalorder %s33, 1
      %p578 = por %p576, %p577
      %p579 = scmp.ne.s32.totalorder %s571, %s574
      %p580 = scmp.eq.s32.totalorder %s33, 0
      %p581 = por %p579, %p580
      %p582 = scmp.ne.s32.totalorder %s571, %s574
      %p583 = scmp.eq.s32.totalorder %s38, 1
      %p584 = por %p582, %p583
      %p585 = scmp.ne.s32.totalorder %s574, %s575
      %p586 = scmp.eq.s32.totalorder %s38, 0
      %p587 = por %p585, %p586
      %p588 = scmp.ne.s32.totalorder %s574, %s575
      %p589 = scmp.eq.s32.totalorder %s39, 1
      %p590 = por %p588, %p589
      %p592 = scmp.ne.s32.totalorder %s575, %s591
      %p593 = scmp.eq.s32.totalorder %s39, 0
      %p594 = por %p592, %p593
      %s595 = ssub.s32 %s33, %s40
      %p596 = scmp.eq.s32.totalorder %s595, 0
      %s598 = sadd.s32 %s597, 1
      %s599 = scalar_select %p596, %s597, %s598
      %p602 = pneg %p596
      %p603 = scmp.eq.s32.totalorder %s33, 1
      %p604 = por %p602, %p603
      %p605 = scmp.ne.s32.totalorder %s597, %s600
      %p606 = scmp.eq.s32.totalorder %s33, 0
      %p607 = por %p605, %p606
      %p608 = scmp.ne.s32.totalorder %s597, %s600
      %p609 = scmp.eq.s32.totalorder %s38, 1
      %p610 = por %p608, %p609
      %p611 = scmp.ne.s32.totalorder %s600, %s601
      %p612 = scmp.eq.s32.totalorder %s38, 0
      %p613 = por %p611, %p612
      %p614 = scmp.ne.s32.totalorder %s600, %s601
      %p615 = scmp.eq.s32.totalorder %s39, 1
      %p616 = por %p614, %p615
      %p618 = scmp.ne.s32.totalorder %s601, %s617
      %p619 = scmp.eq.s32.totalorder %s39, 0
      %p620 = por %p618, %p619
      %s621 = ssub.s32 %s33, %s40
      %p622 = scmp.eq.s32.totalorder %s621, 0
      %s624 = sadd.s32 %s623, 1
      %s625 = scalar_select %p622, %s623, %s624
      %p628 = pneg %p622
      %p629 = scmp.eq.s32.totalorder %s33, 1
      %p630 = por %p628, %p629
      %p631 = scmp.ne.s32.totalorder %s623, %s626
      %p632 = scmp.eq.s32.totalorder %s33, 0
      %p633 = por %p631, %p632
      %p634 = scmp.ne.s32.totalorder %s623, %s626
      %p635 = scmp.eq.s32.totalorder %s38, 1
      %p636 = por %p634, %p635
      %p637 = scmp.ne.s32.totalorder %s626, %s627
      %p638 = scmp.eq.s32.totalorder %s38, 0
      %p639 = por %p637, %p638
      %p640 = scmp.ne.s32.totalorder %s626, %s627
      %p641 = scmp.eq.s32.totalorder %s39, 1
      %p642 = por %p640, %p641
      %p644 = scmp.ne.s32.totalorder %s627, %s643
      %p645 = scmp.eq.s32.totalorder %s39, 0
      %p646 = por %p644, %p645
      %s648 = sadd.s32 %s647, 1
      %p651 = scmp.eq.s32.totalorder %s33, 1
      %p652 = scmp.ne.s32.totalorder %s647, %s649
      %p653 = scmp.eq.s32.totalorder %s33, 0
      %p654 = por %p652, %p653
      %p655 = scmp.ne.s32.totalorder %s647, %s649
      %p656 = scmp.eq.s32.totalorder %s38, 1
      %p657 = por %p655, %p656
      %p658 = scmp.ne.s32.totalorder %s649, %s650
      %p659 = scmp.eq.s32.totalorder %s38, 0
      %p660 = por %p658, %p659
      %p661 = scmp.ne.s32.totalorder %s649, %s650
      %p662 = scmp.eq.s32.totalorder %s39, 1
      %p663 = por %p661, %p662
      %p665 = scmp.ne.s32.totalorder %s650, %s664
      %p666 = scmp.eq.s32.totalorder %s39, 0
      %p667 = por %p665, %p666
      %p668 = scmp.le.s32.totalorder 1, %s33
      %p669 = scmp.lt.s32.totalorder %s33, 3
      %p670 = pnand %p668, %p669
      %p671 = pneg %p670
      // Predicated region
      $region9: #{pubmedbert_classifier_forward.1} parent=5 // pred_check
        _
      $region10: #{pubmedbert_classifier_forward.1} parent=5 // pred_check_branch
        %673 = sbr.rel (%p670) target = $region12
      $region11: #{pubmedbert_classifier_forward.1} parent=5 // pred_region
        %s674 = ssub.s32 %s33, 1
        // Predicated region
        $region13: #{pubmedbert_classifier_forward.1} parent=11 // pred_check
          %p675 = pneg %p54
        $region14: #{pubmedbert_classifier_forward.1} parent=11 // pred_check_branch
          %677 = sbr.rel (%p675) target = $region16
        $region15: #{pubmedbert_classifier_forward.1} parent=11 // pred_region
          _
        $region16: #{pubmedbert_classifier_forward.1} parent=11 // pred_fallthru
          _
        // Predicated region
        $region17: #{pubmedbert_classifier_forward.1} parent=11 // pred_check
          %p678 = pneg %p75
        $region18: #{pubmedbert_classifier_forward.1} parent=11 // pred_check_branch
          %680 = sbr.rel (%p678) target = $region20
        $region19: #{pubmedbert_classifier_forward.1} parent=11 // pred_region
          _
        $region20: #{pubmedbert_classifier_forward.1} parent=11 // pred_fallthru
          _
        // Predicated region
        $region21: #{pubmedbert_classifier_forward.1} parent=11 // pred_check
          %p681 = pneg %p96
        $region22: #{pubmedbert_classifier_forward.1} parent=11 // pred_check_branch
          %683 = sbr.rel (%p681) target = $region24
        $region23: #{pubmedbert_classifier_forward.1} parent=11 // pred_region
          _
        $region24: #{pubmedbert_classifier_forward.1} parent=11 // pred_fallthru
          _
        // Predicated region
        $region25: #{pubmedbert_classifier_forward.1} parent=11 // pred_check
          %p684 = pneg %p117
        $region26: #{pubmedbert_classifier_forward.1} parent=11 // pred_check_branch
          %686 = sbr.rel (%p684) target = $region28
        $region27: #{pubmedbert_classifier_forward.1} parent=11 // pred_region
          _
        $region28: #{pubmedbert_classifier_forward.1} parent=11 // pred_fallthru
          _
        // Predicated region
        $region29: #{pubmedbert_classifier_forward.1} parent=11 // pred_check
          %p687 = pneg %p138
        $region30: #{pubmedbert_classifier_forward.1} parent=11 // pred_check_branch
          %689 = sbr.rel (%p687) target = $region32
        $region31: #{pubmedbert_classifier_forward.1} parent=11 // pred_region
          _
        $region32: #{pubmedbert_classifier_forward.1} parent=11 // pred_fallthru
          _
        // Predicated region
        $region33: #{pubmedbert_classifier_forward.1} parent=11 // pred_check
          %p690 = pneg %p159
        $region34: #{pubmedbert_classifier_forward.1} parent=11 // pred_check_branch
          %692 = sbr.rel (%p690) target = $region36
        $region35: #{pubmedbert_classifier_forward.1} parent=11 // pred_region
          _
        $region36: #{pubmedbert_classifier_forward.1} parent=11 // pred_fallthru
          _
        // Predicated region
        $region37: #{pubmedbert_classifier_forward.1} parent=11 // pred_check
          %p693 = pneg %p180
        $region38: #{pubmedbert_classifier_forward.1} parent=11 // pred_check_branch
          %695 = sbr.rel (%p693) target = $region40
        $region39: #{pubmedbert_classifier_forward.1} parent=11 // pred_region
          _
        $region40: #{pubmedbert_classifier_forward.1} parent=11 // pred_fallthru
          _
        // Predicated region
        $region41: #{pubmedbert_classifier_forward.1} parent=11 // pred_check
          %p696 = pneg %p201
        $region42: #{pubmedbert_classifier_forward.1} parent=11 // pred_check_branch
          %698 = sbr.rel (%p696) target = $region44
        $region43: #{pubmedbert_classifier_forward.1} parent=11 // pred_region
          _
        $region44: #{pubmedbert_classifier_forward.1} parent=11 // pred_fallthru
          _
        // Predicated region
        $region45: #{pubmedbert_classifier_forward.1} parent=11 // pred_check
          %p699 = pneg %p222
        $region46: #{pubmedbert_classifier_forward.1} parent=11 // pred_check_branch
          %701 = sbr.rel (%p699) target = $region48
        $region47: #{pubmedbert_classifier_forward.1} parent=11 // pred_region
          _
        $region48: #{pubmedbert_classifier_forward.1} parent=11 // pred_fallthru
          _
        // Predicated region
        $region49: #{pubmedbert_classifier_forward.1} parent=11 // pred_check
          %p702 = pneg %p243
        $region50: #{pubmedbert_classifier_forward.1} parent=11 // pred_check_branch
          %704 = sbr.rel (%p702) target = $region52
        $region51: #{pubmedbert_classifier_forward.1} parent=11 // pred_region
          _
        $region52: #{pubmedbert_classifier_forward.1} parent=11 // pred_fallthru
          _
        // Predicated region
        $region53: #{pubmedbert_classifier_forward.1} parent=11 // pred_check
          %p705 = pneg %p264
        $region54: #{pubmedbert_classifier_forward.1} parent=11 // pred_check_branch
          %707 = sbr.rel (%p705) target = $region56
        $region55: #{pubmedbert_classifier_forward.1} parent=11 // pred_region
          _
        $region56: #{pubmedbert_classifier_forward.1} parent=11 // pred_fallthru
          _
        // Predicated region
        $region57: #{pubmedbert_classifier_forward.1} parent=11 // pred_check
          %p708 = pneg %p285
        $region58: #{pubmedbert_classifier_forward.1} parent=11 // pred_check_branch
          %710 = sbr.rel (%p708) target = $region60
        $region59: #{pubmedbert_classifier_forward.1} parent=11 // pred_region
          _
        $region60: #{pubmedbert_classifier_forward.1} parent=11 // pred_fallthru
          _
        // Predicated region
        $region61: #{pubmedbert_classifier_forward.1} parent=11 // pred_check
          %p711 = pneg %p306
        $region62: #{pubmedbert_classifier_forward.1} parent=11 // pred_check_branch
          %713 = sbr.rel (%p711) target = $region64
        $region63: #{pubmedbert_classifier_forward.1} parent=11 // pred_region
          _
        $region64: #{pubmedbert_classifier_forward.1} parent=11 // pred_fallthru
          _
        // Predicated region
        $region65: #{pubmedbert_classifier_forward.1} parent=11 // pred_check
          %p714 = pneg %p327
        $region66: #{pubmedbert_classifier_forward.1} parent=11 // pred_check_branch
          %716 = sbr.rel (%p714) target = $region68
        $region67: #{pubmedbert_classifier_forward.1} parent=11 // pred_region
          _
        $region68: #{pubmedbert_classifier_forward.1} parent=11 // pred_fallthru
          _
      $region12: #{pubmedbert_classifier_forward.1} parent=5 // pred_fallthru
        _
      %p717 = scmp.lt.s32.totalorder %s33, 2
      // Predicated region
      $region69: #{pubmedbert_classifier_forward.1} parent=5 // pred_check
        %p718 = pneg %p717
      $region70: #{pubmedbert_classifier_forward.1} parent=5 // pred_check_branch
        %720 = sbr.rel (%p718) target = $region72
      $region71: #{pubmedbert_classifier_forward.1} parent=5 // pred_region
        // Predicated region
        $region73: #{pubmedbert_classifier_forward.1} parent=71 // pred_check
          %p721 = pneg %p347
        $region74: #{pubmedbert_classifier_forward.1} parent=71 // pred_check_branch
          %723 = sbr.rel (%p721) target = $region76
        $region75: #{pubmedbert_classifier_forward.1} parent=71 // pred_region
          %p724 = scmp.lt.s32.totalorder %s33, 1
          %s725 = scalar_select %p724, %s33, 1
          %s726 = smul.addr %s725, 4
          %s727 = smul.addr %s726, 4
          %s728 = scalar_lea.vmem %s14, %s727
        $region76: #{pubmedbert_classifier_forward.1} parent=71 // pred_fallthru
          _
        // Predicated region
        $region77: #{pubmedbert_classifier_forward.1} parent=71 // pred_check
          %p729 = pneg %p373
        $region78: #{pubmedbert_classifier_forward.1} parent=71 // pred_check_branch
          %731 = sbr.rel (%p729) target = $region80
        $region79: #{pubmedbert_classifier_forward.1} parent=71 // pred_region
          %p732 = scmp.lt.s32.totalorder %s33, 1
          %s733 = scalar_select %p732, %s33, 1
          %s734 = scalar_lea.vmem %s15, %s733
        $region80: #{pubmedbert_classifier_forward.1} parent=71 // pred_fallthru
          _
        // Predicated region
        $region81: #{pubmedbert_classifier_forward.1} parent=71 // pred_check
          %p735 = pneg %p399
        $region82: #{pubmedbert_classifier_forward.1} parent=71 // pred_check_branch
          %737 = sbr.rel (%p735) target = $region84
        $region83: #{pubmedbert_classifier_forward.1} parent=71 // pred_region
          %p738 = scmp.lt.s32.totalorder %s33, 1
          %s739 = scalar_select %p738, %s33, 1
          %s740 = smul.addr %s739, 4
          %s741 = smul.addr %s740, 4
          %s742 = scalar_lea.vmem %s16, %s741
        $region84: #{pubmedbert_classifier_forward.1} parent=71 // pred_fallthru
          _
        // Predicated region
        $region85: #{pubmedbert_classifier_forward.1} parent=71 // pred_check
          %p743 = pneg %p425
        $region86: #{pubmedbert_classifier_forward.1} parent=71 // pred_check_branch
          %745 = sbr.rel (%p743) target = $region88
        $region87: #{pubmedbert_classifier_forward.1} parent=71 // pred_region
          %p746 = scmp.lt.s32.totalorder %s33, 1
          %s747 = scalar_select %p746, %s33, 1
          %s748 = scalar_lea.vmem %s17, %s747
        $region88: #{pubmedbert_classifier_forward.1} parent=71 // pred_fallthru
          _
        // Predicated region
        $region89: #{pubmedbert_classifier_forward.1} parent=71 // pred_check
          %p749 = pneg %p451
        $region90: #{pubmedbert_classifier_forward.1} parent=71 // pred_check_branch
          %751 = sbr.rel (%p749) target = $region92
        $region91: #{pubmedbert_classifier_forward.1} parent=71 // pred_region
          %p752 = scmp.lt.s32.totalorder %s33, 1
          %s753 = scalar_select %p752, %s33, 1
          %s754 = scalar_lea.vmem %s18, %s753
        $region92: #{pubmedbert_classifier_forward.1} parent=71 // pred_fallthru
          _
        // Predicated region
        $region93: #{pubmedbert_classifier_forward.1} parent=71 // pred_check
          %p755 = pneg %p477
        $region94: #{pubmedbert_classifier_forward.1} parent=71 // pred_check_branch
          %757 = sbr.rel (%p755) target = $region96
        $region95: #{pubmedbert_classifier_forward.1} parent=71 // pred_region
          %p758 = scmp.lt.s32.totalorder %s33, 1
          %s759 = scalar_select %p758, %s33, 1
          %s760 = scalar_lea.vmem %s19, %s759
        $region96: #{pubmedbert_classifier_forward.1} parent=71 // pred_fallthru
          _
        // Predicated region
        $region97: #{pubmedbert_classifier_forward.1} parent=71 // pred_check
          %p761 = pneg %p503
        $region98: #{pubmedbert_classifier_forward.1} parent=71 // pred_check_branch
          %763 = sbr.rel (%p761) target = $region100
        $region99: #{pubmedbert_classifier_forward.1} parent=71 // pred_region
          %p764 = scmp.lt.s32.totalorder %s33, 1
          %s765 = scalar_select %p764, %s33, 1
          %s766 = smul.addr %s765, 4
          %s767 = smul.addr %s766, 4
          %s768 = scalar_lea.vmem %s20, %s767
        $region100: #{pubmedbert_classifier_forward.1} parent=71 // pred_fallthru
          _
        // Predicated region
        $region101: #{pubmedbert_classifier_forward.1} parent=71 // pred_check
          %p769 = pneg %p529
        $region102: #{pubmedbert_classifier_forward.1} parent=71 // pred_check_branch
          %771 = sbr.rel (%p769) target = $region104
        $region103: #{pubmedbert_classifier_forward.1} parent=71 // pred_region
          %p772 = scmp.lt.s32.totalorder %s33, 1
          %s773 = scalar_select %p772, %s33, 1
          %s774 = scalar_lea.vmem %s21, %s773
        $region104: #{pubmedbert_classifier_forward.1} parent=71 // pred_fallthru
          _
        // Predicated region
        $region105: #{pubmedbert_classifier_forward.1} parent=71 // pred_check
          %p775 = pneg %p555
        $region106: #{pubmedbert_classifier_forward.1} parent=71 // pred_check_branch
          %777 = sbr.rel (%p775) target = $region108
        $region107: #{pubmedbert_classifier_forward.1} parent=71 // pred_region
          %p778 = scmp.lt.s32.totalorder %s33, 1
          %s779 = scalar_select %p778, %s33, 1
          %s780 = smul.addr %s779, 8
          %s781 = smul.addr %s780, 4
          %s782 = scalar_lea.vmem %s22, %s781
        $region108: #{pubmedbert_classifier_forward.1} parent=71 // pred_fallthru
          _
        // Predicated region
        $region109: #{pubmedbert_classifier_forward.1} parent=71 // pred_check
          %p783 = pneg %p581
        $region110: #{pubmedbert_classifier_forward.1} parent=71 // pred_check_branch
          %785 = sbr.rel (%p783) target = $region112
        $region111: #{pubmedbert_classifier_forward.1} parent=71 // pred_region
          %p786 = scmp.lt.s32.totalorder %s33, 1
          %s787 = scalar_select %p786, %s33, 1
          %s788 = scalar_lea.vmem %s23, %s787
        $region112: #{pubmedbert_classifier_forward.1} parent=71 // pred_fallthru
          _
        // Predicated region
        $region113: #{pubmedbert_classifier_forward.1} parent=71 // pred_check
          %p789 = pneg %p607
        $region114: #{pubmedbert_classifier_forward.1} parent=71 // pred_check_branch
          %791 = sbr.rel (%p789) target = $region116
        $region115: #{pubmedbert_classifier_forward.1} parent=71 // pred_region
          %p792 = scmp.lt.s32.totalorder %s33, 1
          %s793 = scalar_select %p792, %s33, 1
          %s794 = scalar_lea.vmem %s24, %s793
        $region116: #{pubmedbert_classifier_forward.1} parent=71 // pred_fallthru
          _
        // Predicated region
        $region117: #{pubmedbert_classifier_forward.1} parent=71 // pred_check
          %p795 = pneg %p633
        $region118: #{pubmedbert_classifier_forward.1} parent=71 // pred_check_branch
          %797 = sbr.rel (%p795) target = $region120
        $region119: #{pubmedbert_classifier_forward.1} parent=71 // pred_region
          %p798 = scmp.lt.s32.totalorder %s33, 1
          %s799 = scalar_select %p798, %s33, 1
          %s800 = scalar_lea.vmem %s25, %s799
        $region120: #{pubmedbert_classifier_forward.1} parent=71 // pred_fallthru
          _
      $region72: #{pubmedbert_classifier_forward.1} parent=5 // pred_fallthru
        _
      %p801 = scmp.le.s32.totalorder 1, %s33
      %p802 = scmp.lt.s32.totalorder %s33, 3
      %p803 = pnand %p801, %p802
      %p804 = pneg %p803
      // Predicated region
      $region121: #{pubmedbert_classifier_forward.1} parent=5 // pred_check
        _
      $region122: #{pubmedbert_classifier_forward.1} parent=5 // pred_check_branch
        %806 = sbr.rel (%p803) target = $region124
      $region123: #{pubmedbert_classifier_forward.1} parent=5 // pred_region
        %s807 = ssub.s32 %s33, 1
        %p808 = pneg %p54
        %p809 = pneg %p51
        %p810 = pneg %p75
        %p811 = pneg %p72
        %p812 = pneg %p96
        %p813 = pneg %p93
        %p814 = pneg %p117
        %p815 = pneg %p114
        %p816 = pneg %p138
        %p817 = pneg %p135
        %p818 = pneg %p159
        %p819 = pneg %p156
        %p820 = pneg %p180
        %p821 = pneg %p177
        %p822 = pneg %p201
        %p823 = pneg %p198
        %p824 = pneg %p222
        %p825 = pneg %p219
        %p826 = pneg %p243
        %p827 = pneg %p240
        %p828 = pneg %p264
        %p829 = pneg %p261
        %p830 = pneg %p285
        %p831 = pneg %p282
        %p832 = pneg %p306
        %p833 = pneg %p303
        %p834 = pneg %p327
        %p835 = pneg %p324
        %p836 = scmp.lt.s32.totalorder %s38, 1
        %s837 = scalar_select %p836, %s38, 1
        %s838 = smul.addr %s837, 4
        %s839 = smul.addr %s838, 4
        %s840 = scalar_lea.vmem %s14, %s839
        %p841 = pneg %p353
        %p842 = pneg %p350
        %p843 = scmp.lt.s32.totalorder %s38, 1
        %s844 = scalar_select %p843, %s38, 1
        %s845 = scalar_lea.vmem %s15, %s844
        %p846 = pneg %p379
        %p847 = pneg %p376
        %p848 = scmp.lt.s32.totalorder %s38, 1
        %s849 = scalar_select %p848, %s38, 1
        %s850 = smul.addr %s849, 4
        %s851 = smul.addr %s850, 4
        %s852 = scalar_lea.vmem %s16, %s851
        %p853 = pneg %p405
        %p854 = pneg %p402
        %p855 = scmp.lt.s32.totalorder %s38, 1
        %s856 = scalar_select %p855, %s38, 1
        %s857 = scalar_lea.vmem %s17, %s856
        %p858 = pneg %p431
        %p859 = pneg %p428
        %p860 = scmp.lt.s32.totalorder %s38, 1
        %s861 = scalar_select %p860, %s38, 1
        %s862 = scalar_lea.vmem %s18, %s861
        %p863 = pneg %p457
        %p864 = pneg %p454
        %p865 = scmp.lt.s32.totalorder %s38, 1
        %s866 = scalar_select %p865, %s38, 1
        %s867 = scalar_lea.vmem %s19, %s866
        %p868 = pneg %p483
        %p869 = pneg %p480
        %p870 = scmp.lt.s32.totalorder %s38, 1
        %s871 = scalar_select %p870, %s38, 1
        %s872 = smul.addr %s871, 4
        %s873 = smul.addr %s872, 4
        %s874 = scalar_lea.vmem %s20, %s873
        %p875 = pneg %p509
        %p876 = pneg %p506
        %p877 = scmp.lt.s32.totalorder %s38, 1
        %s878 = scalar_select %p877, %s38, 1
        %s879 = scalar_lea.vmem %s21, %s878
        %p880 = pneg %p535
        %p881 = pneg %p532
        %p882 = scmp.lt.s32.totalorder %s38, 1
        %s883 = scalar_select %p882, %s38, 1
        %s884 = smul.addr %s883, 8
        %s885 = smul.addr %s884, 4
        %s886 = scalar_lea.vmem %s22, %s885
        %p887 = pneg %p561
        %p888 = pneg %p558
        %p889 = scmp.lt.s32.totalorder %s38, 1
        %s890 = scalar_select %p889, %s38, 1
        %s891 = scalar_lea.vmem %s23, %s890
        %p892 = pneg %p587
        %p893 = pneg %p584
        %p894 = scmp.lt.s32.totalorder %s38, 1
        %s895 = scalar_select %p894, %s38, 1
        %s896 = scalar_lea.vmem %s24, %s895
        %p897 = pneg %p613
        %p898 = pneg %p610
        %p899 = scmp.lt.s32.totalorder %s38, 1
        %s900 = scalar_select %p899, %s38, 1
        %s901 = scalar_lea.vmem %s25, %s900
        %p902 = pneg %p639
        %p903 = pneg %p636
        %p904 = pneg %p660
        %p905 = pneg %p657
        %p906 = scmp.lt.s32.totalorder %s38, 1
        %s907 = scalar_select %p906, %s38, 1
        %s908 = smul.addr %s907, 4
        %s909 = smul.addr %s908, 4
        %s910 = scalar_lea.vmem %s14, %s909
        %p911 = scmp.lt.s32.totalorder %s38, 1
        %s912 = scalar_select %p911, %s38, 1
        %s913 = scalar_lea.vmem %s15, %s912
        %p914 = scmp.lt.s32.totalorder %s38, 1
        %s915 = scalar_select %p914, %s38, 1
        %s916 = smul.addr %s915, 4
        %s917 = smul.addr %s916, 4
        %s918 = scalar_lea.vmem %s16, %s917
        %p919 = scmp.lt.s32.totalorder %s38, 1
        %s920 = scalar_select %p919, %s38, 1
        %s921 = scalar_lea.vmem %s17, %s920
        %p922 = scmp.lt.s32.totalorder %s38, 1
        %s923 = scalar_select %p922, %s38, 1
        %s924 = scalar_lea.vmem %s18, %s923
        %p925 = scmp.lt.s32.totalorder %s38, 1
        %s926 = scalar_select %p925, %s38, 1
        %s927 = scalar_lea.vmem %s19, %s926
        %p928 = scmp.lt.s32.totalorder %s38, 1
        %s929 = scalar_select %p928, %s38, 1
        %s930 = smul.addr %s929, 4
        %s931 = smul.addr %s930, 4
        %s932 = scalar_lea.vmem %s20, %s931
        %p933 = scmp.lt.s32.totalorder %s38, 1
        %s934 = scalar_select %p933, %s38, 1
        %s935 = scalar_lea.vmem %s21, %s934
        %p936 = scmp.lt.s32.totalorder %s38, 1
        %s937 = scalar_select %p936, %s38, 1
        %s938 = smul.addr %s937, 8
        %s939 = smul.addr %s938, 4
        %s940 = scalar_lea.vmem %s22, %s939
        %p941 = scmp.lt.s32.totalorder %s38, 1
        %s942 = scalar_select %p941, %s38, 1
        %s943 = scalar_lea.vmem %s23, %s942
        %p944 = scmp.lt.s32.totalorder %s38, 1
        %s945 = scalar_select %p944, %s38, 1
        %s946 = scalar_lea.vmem %s24, %s945
        %p947 = scmp.lt.s32.totalorder %s38, 1
        %s948 = scalar_select %p947, %s38, 1
        %s949 = scalar_lea.vmem %s25, %s948
        %p951 = scmp.eq.s32.totalorder %s38, 0
        // Predicated region
        $region125: #{pubmedbert_classifier_forward.1} parent=123 // pred_check
          %p952 = pneg %p951
        $region126: #{pubmedbert_classifier_forward.1} parent=123 // pred_check_branch
          %954 = sbr.rel (%p952) target = $region128
        $region127: #{pubmedbert_classifier_forward.1} parent=123 // pred_region
          %v955 = vld [vmem:[%s0] sm:$0xff]
          %v956 = vld [vmem:[%s0 + $0x8] sm:$0xff]
          %v957 = vld [vmem:[%s2] sm:$0x1]
          %v958 = vld [vmem:[%s3] sm:$0x1]
          %vm959 = vcmask 261120
          %v960 = vsel %vm959, %v955, 0.0
          %961 = vadd.xlane.f32.xlu0 %v960
          %v962 = vpop.xlane.xlu0 %961
          %v963 = vsel %vm959, %v956, 0.0
          %964 = vadd.xlane.f32.xlu0 %v963
          %v965 = vpop.xlane.xlu0 %964
          %v966 = vrcp.pop 32.0
          %v967 = vmul.f32 %v962, %v966
          %v968 = vmul.f32 %v965, %v966
          %v969 = vsub.f32 %v955, %v967
          %v970 = vsub.f32 %v956, %v968
          %v971 = vmul.f32 %v969, %v969
          %v972 = vmul.f32 %v970, %v970
          %v973 = vsel %vm959, %v971, 0.0
          %974 = vadd.xlane.f32.xlu0 %v973
          %v975 = vpop.xlane.xlu0 %974
          %v976 = vsel %vm959, %v972, 0.0
          %977 = vadd.xlane.f32.xlu0 %v976
          %v978 = vpop.xlane.xlu0 %977
          %v979 = vmul.f32 %v975, %v966
          %v980 = vmul.f32 %v978, %v966
          %v981 = vadd.f32 %v979, 1e-12
          %v982 = vadd.f32 %v980, 1e-12
          %v983 = vrsqrt.pop %v981
          %v984 = vrsqrt.pop %v982
          %v985 = vmul.f32 %v969, %v983
          %v986 = vmul.f32 %v970, %v984
          %v988 = vlaneseq
          %v989 = vshrl.u32 %v988, 7
          %v990 = vsub.s32 0, %v989
          %v991 = vrot.slane %v957, %v990
          %v993 = vmul.f32 %v985, %v991
          %v994 = vmul.f32 %v986, %v991
          %v996 = vlaneseq
          %v997 = vshrl.u32 %v996, 7
          %v998 = vsub.s32 0, %v997
          %v999 = vrot.slane %v958, %v998
          %v1001 = vadd.f32 %v993, %v999
          %v1002 = vadd.f32 %v994, %v999
          %1003 = vst.msk [vmem:[#allocation2] sm:$0xff] %vm959, %v1001
          %1004 = vst.msk [vmem:[#allocation2 + $0x8] sm:$0xff] %vm959, %v1002
          %v1005 = vld [vmem:[%s1] sm:$0x3]
          %v1006 = vsub.f32 1.0, %v1005
          %v1007 = vmul.f32 %v1006, -1e+09
          %vm1008 = vcmask 58368
          %1009 = vst.msk [vmem:[#allocation3] sm:$0x3] %vm1008, %v1007
        $region128: #{pubmedbert_classifier_forward.1} parent=123 // pred_fallthru
          _
        %v1010 = vld [vmem:[#allocation2] sm:$0xff]
        %v1011 = vld [vmem:[#allocation2 + $0x8] sm:$0xff]
        %v1012 = vpack.c.bf16 %v1011, %v1010
        %v1013 = vld [vmem:[%s910] sm:$0xf]
        %v1014 = vld [vmem:[%s910 + $0x4] sm:$0xf]
        %v1015 = vld [vmem:[%s910 + $0x8] sm:$0xf]
        %v1016 = vld [vmem:[%s910 + $0xc] sm:$0xf]
        %v1017 = vld [vmem:[%s913] sm:$0x1]
        %v1019 = vlaneseq
        %v1020 = vshrl.u32 %v1019, 7
        %v1021 = vsub.s32 0, %v1020
        %v1022 = vrot.slane %v1017, %v1021
        %v1028 = vunpack.c.l.b16 %v1013
        %v1029 = vunpack.c.l.b16 %v1014
        %v1030 = vunpack.c.l.b16 %v1015
        %v1031 = vunpack.c.l.b16 %v1016
        %v1032 = vpack.c.b16 %v1029, %v1028
        %v1033 = vpack.c.b16 %v1031, %v1030
        %vm1036 = vcmask 261120
        %v1038 = vsel %vm1036, %v1012, 0
        %1040 = vmatprep.subr.bf16.mxu0 0
        %1041 = vmatpush1.bf16.msra.mxu0 0
        %1042 = vmatprep.subr.bf16.mxu0 0
        %1043 = vmatpush1.bf16.msra.mxu0 0
        %1044 = vmatprep.subr.bf16.mxu0 0
        %1045 = vmatpush1.bf16.msra.mxu0 0
        %1046 = vmatprep.subr.bf16.mxu0 0
        %1047 = vmatpush1.bf16.msra.mxu0 0
        %1048 = vmatprep.subr.bf16.mxu0 0
        %1049 = vmatpush1.bf16.msra.mxu0 0
        %1050 = vmatprep.subr.bf16.mxu0 0
        %1051 = vmatpush1.bf16.msra.mxu0 0
        %1052 = vmatprep.subr.bf16.mxu0 0
        %1053 = vmatpush1.bf16.msra.mxu0 %v1033
        %1054 = vmatprep.subr.bf16.mxu0 0
        %1055 = vmatpush1.bf16.msra.mxu0 %v1032
        %1056 = vmatprep.subr.bf16.mxu0 0
        %1057 = vmatpush2.bf16.msra.mxu0 0
        %1058 = vmatprep.subr.bf16.mxu0 0
        %1059 = vmatpush2.bf16.msra.mxu0 0
        %1060 = vmatprep.subr.bf16.mxu0 0
        %1061 = vmatpush2.bf16.msra.mxu0 0
        %1062 = vmatprep.subr.bf16.mxu0 0
        %1063 = vmatpush2.bf16.msra.mxu0 0
        %1064 = vmatprep.subr.bf16.mxu0 0
        %1065 = vmatpush2.bf16.msra.mxu0 0
        %1066 = vmatprep.subr.bf16.mxu0 0
        %1067 = vmatpush2.bf16.msra.mxu0 0
        %1068 = vmatprep.subr.bf16.mxu0 0
        %1069 = vmatpush2.bf16.msra.mxu0 0
        %1070 = vmatprep.subr.bf16.mxu0 0
        %1071 = vmatpush2.bf16.msra.mxu0 0
        %1072 = vmatprep.mubr.bf16.mxu0 0
        %1073 = vmatmul.mubr.bf16.gmra.mxu0 %v1038
        %v1074 = vpop.f32.mrf.mxu0
        %v1075 = vadd.f32 %v1022, %v1074
        %v1076 = vpop.f32.mrf.mxu0
        %v1077 = vpop.f32.mrf.mxu0
        %v1078 = vadd.f32 %v1022, %v1077
        %v1079 = vpop.f32.mrf.mxu0
        %1080 = vdwg.mxu0
        %v1081 = vld [vmem:[#allocation3] sm:$0x3]
        %v1084 = vunpack.c.l.s4 1966171168
        %v1085 = vunpack.c.0.s8 %v1084
        %v1086 = vlaneseq
        %v1087 = vshrl.u32 %v1086, 7
        %v1088 = vsub.s32 %v1085, %v1087
        %v1089 = vrot.slane %v1081, %v1088
        %v1090 = vcombine.high %v1089, %v1089
        %v1092 = vunpack.c.l.s4 1966171168
        %v1093 = vunpack.c.0.s8 %v1092
        %v1094 = vlaneseq
        %v1095 = vshrl.u32 %v1094, 7
        %v1096 = vsub.s32 %v1093, %v1095
        %v1097 = vrot.slane %v1089, %v1096
        %v1099 = vunpack.c.l.s4 1966171168
        %v1100 = vunpack.c.0.s8 %v1099
        %v1101 = vlaneseq
        %v1102 = vshrl.u32 %v1101, 7
        %v1103 = vsub.s32 %v1100, %v1102
        %v1104 = vrot.slane %v1090, %v1103
        %v1105 = vpack.c.bf16 %v1075, %v1075
        %v1106 = vpack.c.bf16 %v1078, %v1078
        %v1107 = vlaneseq
        %v1108 = vshrl.u32 %v1107, 7
        %v1109 = vsub.s32 0, %v1108
        %v1110 = vrot.slane %v1097, %v1109
        %v1111 = vlaneseq
        %v1112 = vshrl.u32 %v1111, 7
        %v1113 = vsub.s32 0, %v1112
        %v1114 = vrot.slane %v1104, %v1113
        %1118 = vrot.lane.b32.xlu0 %v1105, 96
        %v1119 = vpop.permute.xlu0 %1118
        %vm1120 = vcmask 130048
        %v1122 = vsel %vm1120, %v1105, 0
        %v1125 = vsel %vm1120, %v1119, 0
        %1127 = vmatprep.subr.bf16.mxu0 0
        %1128 = vmatpush1.bf16.xpose.msra.mxu0 0
        %1129 = vmatprep.subr.bf16.mxu0 0
        %1130 = vmatpush1.bf16.xpose.msra.mxu0 0
        %1131 = vmatprep.subr.bf16.mxu0 0
        %1132 = vmatpush1.bf16.xpose.msra.mxu0 0
        %1133 = vmatprep.subr.bf16.mxu0 0
        %1134 = vmatpush1.bf16.xpose.msra.mxu0 0
        %1135 = vmatprep.subr.bf16.mxu0 0
        %1136 = vmatpush1.bf16.xpose.msra.mxu0 0
        %1137 = vmatprep.subr.bf16.mxu0 0
        %1138 = vmatpush1.bf16.xpose.msra.mxu0 0
        %1139 = vmatprep.subr.bf16.mxu0 0
        %1140 = vmatpush1.bf16.xpose.msra.mxu0 0
        %1141 = vmatprep.subr.bf16.mxu0 0
        %1142 = vmatpush1.bf16.xpose.msra.mxu0 %v1125
        %1143 = vmatprep.subr.bf16.mxu0 0
        %1144 = vmatpush2.bf16.xpose.msra.mxu0 0
        %1145 = vmatprep.subr.bf16.mxu0 0
        %1146 = vmatpush2.bf16.xpose.msra.mxu0 0
        %1147 = vmatprep.subr.bf16.mxu0 0
        %1148 = vmatpush2.bf16.xpose.msra.mxu0 0
        %1149 = vmatprep.subr.bf16.mxu0 0
        %1150 = vmatpush2.bf16.xpose.msra.mxu0 0
        %1151 = vmatprep.subr.bf16.mxu0 0
        %1152 = vmatpush2.bf16.xpose.msra.mxu0 0
        %1153 = vmatprep.subr.bf16.mxu0 0
        %1154 = vmatpush2.bf16.xpose.msra.mxu0 0
        %1155 = vmatprep.subr.bf16.mxu0 0
        %1156 = vmatpush2.bf16.xpose.msra.mxu0 0
        %1157 = vmatprep.subr.bf16.mxu0 0
        %1158 = vmatpush2.bf16.xpose.msra.mxu0 0
        %1159 = vmatprep.mubr.bf16.mxu0 0
        %1160 = vmatmul.mubr.bf16.gmra.mxu0 %v1122
        %v1161 = vpop.f32.mrf.mxu0
        %v1162 = vadd.f32 %v1110, %v1161
        %v1163 = vpop.f32.mrf.mxu0
        %v1164 = vpop.f32.mrf.mxu0
        %v1165 = vpop.f32.mrf.mxu0
        %1166 = vdwg.mxu0
        %1168 = vrot.lane.b32.xlu0 %v1106, 96
        %v1169 = vpop.permute.xlu0 %1168
        %v1171 = vsel %vm1120, %v1106, 0
        %v1174 = vsel %vm1120, %v1169, 0
        %1176 = vmatprep.subr.bf16.mxu0 0
        %1177 = vmatpush1.bf16.xpose.msra.mxu0 0
        %1178 = vmatprep.subr.bf16.mxu0 0
        %1179 = vmatpush1.bf16.xpose.msra.mxu0 0
        %1180 = vmatprep.subr.bf16.mxu0 0
        %1181 = vmatpush1.bf16.xpose.msra.mxu0 0
        %1182 = vmatprep.subr.bf16.mxu0 0
        %1183 = vmatpush1.bf16.xpose.msra.mxu0 0
        %1184 = vmatprep.subr.bf16.mxu0 0
        %1185 = vmatpush1.bf16.xpose.msra.mxu0 0
        %1186 = vmatprep.subr.bf16.mxu0 0
        %1187 = vmatpush1.bf16.xpose.msra.mxu0 0
        %1188 = vmatprep.subr.bf16.mxu0 0
        %1189 = vmatpush1.bf16.xpose.msra.mxu0 0
        %1190 = vmatprep.subr.bf16.mxu0 0
        %1191 = vmatpush1.bf16.xpose.msra.mxu0 %v1174
        %1192 = vmatprep.subr.bf16.mxu0 0
        %1193 = vmatpush2.bf16.xpose.msra.mxu0 0
        %1194 = vmatprep.subr.bf16.mxu0 0
        %1195 = vmatpush2.bf16.xpose.msra.mxu0 0
        %1196 = vmatprep.subr.bf16.mxu0 0
        %1197 = vmatpush2.bf16.xpose.msra.mxu0 0
        %1198 = vmatprep.subr.bf16.mxu0 0
        %1199 = vmatpush2.bf16.xpose.msra.mxu0 0
        %1200 = vmatprep.subr.bf16.mxu0 0
        %1201 = vmatpush2.bf16.xpose.msra.mxu0 0
        %1202 = vmatprep.subr.bf16.mxu0 0
        %1203 = vmatpush2.bf16.xpose.msra.mxu0 0
        %1204 = vmatprep.subr.bf16.mxu0 0
        %1205 = vmatpush2.bf16.xpose.msra.mxu0 0
        %1206 = vmatprep.subr.bf16.mxu0 0
        %1207 = vmatpush2.bf16.xpose.msra.mxu0 0
        %1208 = vmatprep.mubr.bf16.mxu0 0
        %1209 = vmatmul.mubr.bf16.gmra.mxu0 %v1171
        %v1210 = vpop.f32.mrf.mxu0
        %v1211 = vadd.f32 %v1114, %v1210
        %v1212 = vpop.f32.mrf.mxu0
        %v1213 = vpop.f32.mrf.mxu0
        %v1214 = vpop.f32.mrf.mxu0
        %1215 = vdwg.mxu0
        %vm1216 = vcmask 64512
        %v1217 = vsel %vm1216, %v1162, -inf
        %1218 = vmax.xlane.f32.xlu0 %v1217
        %v1219 = vpop.xlane.xlu0 %1218
        %v1220 = vsel %vm1216, %v1211, -inf
        %1221 = vmax.xlane.f32.xlu0 %v1220
        %v1222 = vpop.xlane.xlu0 %1221
        %v1223 = vsub.f32 %v1162, %v1219
        %v1224 = vsub.f32 %v1211, %v1222
        %v1225 = vmul.f32 %v1223, 1.442695
        %v1226 = vpow.pop %v1225
        %v1227 = vmul.f32 %v1224, 1.442695
        %v1228 = vpow.pop %v1227
        %v1229 = vsel %vm1216, %v1226, 0.0
        %1230 = vadd.xlane.f32.xlu0 %v1229
        %v1231 = vpop.xlane.xlu0 %1230
        %v1232 = vsel %vm1216, %v1228, 0.0
        %1233 = vadd.xlane.f32.xlu0 %v1232
        %v1234 = vpop.xlane.xlu0 %1233
        %v1235 = vrcp.pop %v1231
        %v1236 = vrcp.pop %v1234
        %v1237 = vmul.f32 %v1226, %v1235
        %v1238 = vmul.f32 %v1228, %v1236
        %v1239 = vpack.c.bf16 %v1237, %v1237
        %v1240 = vpack.c.bf16 %v1238, %v1238
        %1241 = vrot.lane.b32.xlu0 %v1105, 64
        %v1242 = vpop.permute.xlu0 %1241
        %v1244 = vsel %vm1216, %v1239, 0
        %vm1246 = vcmask 1043456
        %v1248 = vsel %vm1246, %v1242, 0
        %1250 = vmatprep.subr.bf16.mxu0 0
        %1251 = vmatpush1.bf16.msra.mxu0 0
        %1252 = vmatprep.subr.bf16.mxu0 0
        %1253 = vmatpush1.bf16.msra.mxu0 0
        %1254 = vmatprep.subr.bf16.mxu0 0
        %1255 = vmatpush1.bf16.msra.mxu0 0
        %1256 = vmatprep.subr.bf16.mxu0 0
        %1257 = vmatpush1.bf16.msra.mxu0 0
        %1258 = vmatprep.subr.bf16.mxu0 0
        %1259 = vmatpush1.bf16.msra.mxu0 0
        %1260 = vmatprep.subr.bf16.mxu0 0
        %1261 = vmatpush1.bf16.msra.mxu0 0
        %1262 = vmatprep.subr.bf16.mxu0 0
        %1263 = vmatpush1.bf16.msra.mxu0 0
        %1264 = vmatprep.subr.bf16.mxu0 0
        %1265 = vmatpush1.bf16.msra.mxu0 %v1248
        %1266 = vmatprep.subr.bf16.mxu0 0
        %1267 = vmatpush2.bf16.msra.mxu0 0
        %1268 = vmatprep.subr.bf16.mxu0 0
        %1269 = vmatpush2.bf16.msra.mxu0 0
        %1270 = vmatprep.subr.bf16.mxu0 0
        %1271 = vmatpush2.bf16.msra.mxu0 0
        %1272 = vmatprep.subr.bf16.mxu0 0
        %1273 = vmatpush2.bf16.msra.mxu0 0
        %1274 = vmatprep.subr.bf16.mxu0 0
        %1275 = vmatpush2.bf16.msra.mxu0 0
        %1276 = vmatprep.subr.bf16.mxu0 0
        %1277 = vmatpush2.bf16.msra.mxu0 0
        %1278 = vmatprep.subr.bf16.mxu0 0
        %1279 = vmatpush2.bf16.msra.mxu0 0
        %1280 = vmatprep.subr.bf16.mxu0 0
        %1281 = vmatpush2.bf16.msra.mxu0 0
        %1282 = vmatprep.mubr.bf16.mxu0 0
        %1283 = vmatmul.mubr.bf16.gmra.mxu0 %v1244
        %v1284 = vpop.f32.mrf.mxu0
        %v1285 = vadd.f32 0.0, %v1284
        %v1286 = vpop.f32.mrf.mxu0
        %v1287 = vpop.f32.mrf.mxu0
        %v1288 = vpop.f32.mrf.mxu0
        %1289 = vdwg.mxu0
        %1290 = vrot.lane.b32.xlu0 %v1106, 64
        %v1291 = vpop.permute.xlu0 %1290
        %v1293 = vsel %vm1216, %v1240, 0
        %v1296 = vsel %vm1246, %v1291, 0
        %1298 = vmatprep.subr.bf16.mxu0 0
        %1299 = vmatpush1.bf16.msra.mxu0 0
        %1300 = vmatprep.subr.bf16.mxu0 0
        %1301 = vmatpush1.bf16.msra.mxu0 0
        %1302 = vmatprep.subr.bf16.mxu0 0
        %1303 = vmatpush1.bf16.msra.mxu0 0
        %1304 = vmatprep.subr.bf16.mxu0 0
        %1305 = vmatpush1.bf16.msra.mxu0 0
        %1306 = vmatprep.subr.bf16.mxu0 0
        %1307 = vmatpush1.bf16.msra.mxu0 0
        %1308 = vmatprep.subr.bf16.mxu0 0
        %1309 = vmatpush1.bf16.msra.mxu0 0
        %1310 = vmatprep.subr.bf16.mxu0 0
        %1311 = vmatpush1.bf16.msra.mxu0 0
        %1312 = vmatprep.subr.bf16.mxu0 0
        %1313 = vmatpush1.bf16.msra.mxu0 %v1296
        %1314 = vmatprep.subr.bf16.mxu0 0
        %1315 = vmatpush2.bf16.msra.mxu0 0
        %1316 = vmatprep.subr.bf16.mxu0 0
        %1317 = vmatpush2.bf16.msra.mxu0 0
        %1318 = vmatprep.subr.bf16.mxu0 0
        %1319 = vmatpush2.bf16.msra.mxu0 0
        %1320 = vmatprep.subr.bf16.mxu0 0
        %1321 = vmatpush2.bf16.msra.mxu0 0
        %1322 = vmatprep.subr.bf16.mxu0 0
        %1323 = vmatpush2.bf16.msra.mxu0 0
        %1324 = vmatprep.subr.bf16.mxu0 0
        %1325 = vmatpush2.bf16.msra.mxu0 0
        %1326 = vmatprep.subr.bf16.mxu0 0
        %1327 = vmatpush2.bf16.msra.mxu0 0
        %1328 = vmatprep.subr.bf16.mxu0 0
        %1329 = vmatpush2.bf16.msra.mxu0 0
        %1330 = vmatprep.mubr.bf16.mxu0 0
        %1331 = vmatmul.mubr.bf16.gmra.mxu0 %v1293
        %v1332 = vpop.f32.mrf.mxu0
        %v1333 = vadd.f32 0.0, %v1332
        %v1334 = vpop.f32.mrf.mxu0
        %v1335 = vpop.f32.mrf.mxu0
        %v1336 = vpop.f32.mrf.mxu0
        %1337 = vdwg.mxu0
        %1338 = vrot.lane.b32.xlu0 %v1105, 112
        %v1339 = vpop.permute.xlu0 %1338
        %1340 = vrot.lane.b32.xlu0 %v1105, 80
        %v1341 = vpop.permute.xlu0 %1340
        %v1343 = vsel %vm1120, %v1339, 0
        %v1346 = vsel %vm1120, %v1341, 0
        %1348 = vmatprep.subr.bf16.mxu0 0
        %1349 = vmatpush1.bf16.xpose.msra.mxu0 0
        %1350 = vmatprep.subr.bf16.mxu0 0
        %1351 = vmatpush1.bf16.xpose.msra.mxu0 0
        %1352 = vmatprep.subr.bf16.mxu0 0
        %1353 = vmatpush1.bf16.xpose.msra.mxu0 0
        %1354 = vmatprep.subr.bf16.mxu0 0
        %1355 = vmatpush1.bf16.xpose.msra.mxu0 0
        %1356 = vmatprep.subr.bf16.mxu0 0
        %1357 = vmatpush1.bf16.xpose.msra.mxu0 0
        %1358 = vmatprep.subr.bf16.mxu0 0
        %1359 = vmatpush1.bf16.xpose.msra.mxu0 0
        %1360 = vmatprep.subr.bf16.mxu0 0
        %1361 = vmatpush1.bf16.xpose.msra.mxu0 0
        %1362 = vmatprep.subr.bf16.mxu0 0
        %1363 = vmatpush1.bf16.xpose.msra.mxu0 %v1346
        %1364 = vmatprep.subr.bf16.mxu0 0
        %1365 = vmatpush2.bf16.xpose.msra.mxu0 0
        %1366 = vmatprep.subr.bf16.mxu0 0
        %1367 = vmatpush2.bf16.xpose.msra.mxu0 0
        %1368 = vmatprep.subr.bf16.mxu0 0
        %1369 = vmatpush2.bf16.xpose.msra.mxu0 0
        %1370 = vmatprep.subr.bf16.mxu0 0
        %1371 = vmatpush2.bf16.xpose.msra.mxu0 0
        %1372 = vmatprep.subr.bf16.mxu0 0
        %1373 = vmatpush2.bf16.xpose.msra.mxu0 0
        %1374 = vmatprep.subr.bf16.mxu0 0
        %1375 = vmatpush2.bf16.xpose.msra.mxu0 0
        %1376 = vmatprep.subr.bf16.mxu0 0
        %1377 = vmatpush2.bf16.xpose.msra.mxu0 0
        %1378 = vmatprep.subr.bf16.mxu0 0
        %1379 = vmatpush2.bf16.xpose.msra.mxu0 0
        %1380 = vmatprep.mubr.bf16.mxu0 0
        %1381 = vmatmul.mubr.bf16.gmra.mxu0 %v1343
        %v1382 = vpop.f32.mrf.mxu0
        %v1383 = vadd.f32 %v1110, %v1382
        %v1384 = vpop.f32.mrf.mxu0
        %v1385 = vpop.f32.mrf.mxu0
        %v1386 = vpop.f32.mrf.mxu0
        %1387 = vdwg.mxu0
        %1388 = vrot.lane.b32.xlu0 %v1106, 112
        %v1389 = vpop.permute.xlu0 %1388
        %1390 = vrot.lane.b32.xlu0 %v1106, 80
        %v1391 = vpop.permute.xlu0 %1390
        %v1393 = vsel %vm1120, %v1389, 0
        %v1396 = vsel %vm1120, %v1391, 0
        %1398 = vmatprep.subr.bf16.mxu0 0
        %1399 = vmatpush1.bf16.xpose.msra.mxu0 0
        %1400 = vmatprep.subr.bf16.mxu0 0
        %1401 = vmatpush1.bf16.xpose.msra.mxu0 0
        %1402 = vmatprep.subr.bf16.mxu0 0
        %1403 = vmatpush1.bf16.xpose.msra.mxu0 0
        %1404 = vmatprep.subr.bf16.mxu0 0
        %1405 = vmatpush1.bf16.xpose.msra.mxu0 0
        %1406 = vmatprep.subr.bf16.mxu0 0
        %1407 = vmatpush1.bf16.xpose.msra.mxu0 0
        %1408 = vmatprep.subr.bf16.mxu0 0
        %1409 = vmatpush1.bf16.xpose.msra.mxu0 0
        %1410 = vmatprep.subr.bf16.mxu0 0
        %1411 = vmatpush1.bf16.xpose.msra.mxu0 0
        %1412 = vmatprep.subr.bf16.mxu0 0
        %1413 = vmatpush1.bf16.xpose.msra.mxu0 %v1396
        %1414 = vmatprep.subr.bf16.mxu0 0
        %1415 = vmatpush2.bf16.xpose.msra.mxu0 0
        %1416 = vmatprep.subr.bf16.mxu0 0
        %1417 = vmatpush2.bf16.xpose.msra.mxu0 0
        %1418 = vmatprep.subr.bf16.mxu0 0
        %1419 = vmatpush2.bf16.xpose.msra.mxu0 0
        %1420 = vmatprep.subr.bf16.mxu0 0
        %1421 = vmatpush2.bf16.xpose.msra.mxu0 0
        %1422 = vmatprep.subr.bf16.mxu0 0
        %1423 = vmatpush2.bf16.xpose.msra.mxu0 0
        %1424 = vmatprep.subr.bf16.mxu0 0
        %1425 = vmatpush2.bf16.xpose.msra.mxu0 0
        %1426 = vmatprep.subr.bf16.mxu0 0
        %1427 = vmatpush2.bf16.xpose.msra.mxu0 0
        %1428 = vmatprep.subr.bf16.mxu0 0
        %1429 = vmatpush2.bf16.xpose.msra.mxu0 0
        %1430 = vmatprep.mubr.bf16.mxu0 0
        %1431 = vmatmul.mubr.bf16.gmra.mxu0 %v1393
        %v1432 = vpop.f32.mrf.mxu0
        %v1433 = vadd.f32 %v1114, %v1432
        %v1434 = vpop.f32.mrf.mxu0
        %v1435 = vpop.f32.mrf.mxu0
        %v1436 = vpop.f32.mrf.mxu0
        %1437 = vdwg.mxu0
        %v1438 = vsel %vm1216, %v1383, -inf
        %1439 = vmax.xlane.f32.xlu0 %v1438
        %v1440 = vpop.xlane.xlu0 %1439
        %v1441 = vsel %vm1216, %v1433, -inf
        %1442 = vmax.xlane.f32.xlu0 %v1441
        %v1443 = vpop.xlane.xlu0 %1442
        %v1444 = vsub.f32 %v1383, %v1440
        %v1445 = vsub.f32 %v1433, %v1443
        %v1446 = vmul.f32 %v1444, 1.442695
        %v1447 = vpow.pop %v1446
        %v1448 = vmul.f32 %v1445, 1.442695
        %v1449 = vpow.pop %v1448
        %v1450 = vsel %vm1216, %v1447, 0.0
        %1451 = vadd.xlane.f32.xlu0 %v1450
        %v1452 = vpop.xlane.xlu0 %1451
        %v1453 = vsel %vm1216, %v1449, 0.0
        %1454 = vadd.xlane.f32.xlu0 %v1453
        %v1455 = vpop.xlane.xlu0 %1454
        %v1456 = vrcp.pop %v1452
        %v1457 = vrcp.pop %v1455
        %v1458 = vmul.f32 %v1447, %v1456
        %v1459 = vmul.f32 %v1449, %v1457
        %v1460 = vpack.c.bf16 %v1458, %v1458
        %v1461 = vpack.c.bf16 %v1459, %v1459
        %1462 = vrot.lane.b32.xlu0 %v1105, 48
        %v1463 = vpop.permute.xlu0 %1462
        %v1465 = vsel %vm1216, %v1460, 0
        %v1468 = vsel %vm1246, %v1463, 0
        %1470 = vmatprep.subr.bf16.mxu0 0
        %1471 = vmatpush1.bf16.msra.mxu0 0
        %1472 = vmatprep.subr.bf16.mxu0 0
        %1473 = vmatpush1.bf16.msra.mxu0 0
        %1474 = vmatprep.subr.bf16.mxu0 0
        %1475 = vmatpush1.bf16.msra.mxu0 0
        %1476 = vmatprep.subr.bf16.mxu0 0
        %1477 = vmatpush1.bf16.msra.mxu0 0
        %1478 = vmatprep.subr.bf16.mxu0 0
        %1479 = vmatpush1.bf16.msra.mxu0 0
        %1480 = vmatprep.subr.bf16.mxu0 0
        %1481 = vmatpush1.bf16.msra.mxu0 0
        %1482 = vmatprep.subr.bf16.mxu0 0
        %1483 = vmatpush1.bf16.msra.mxu0 0
        %1484 = vmatprep.subr.bf16.mxu0 0
        %1485 = vmatpush1.bf16.msra.mxu0 %v1468
        %1486 = vmatprep.subr.bf16.mxu0 0
        %1487 = vmatpush2.bf16.msra.mxu0 0
        %1488 = vmatprep.subr.bf16.mxu0 0
        %1489 = vmatpush2.bf16.msra.mxu0 0
        %1490 = vmatprep.subr.bf16.mxu0 0
        %1491 = vmatpush2.bf16.msra.mxu0 0
        %1492 = vmatprep.subr.bf16.mxu0 0
        %1493 = vmatpush2.bf16.msra.mxu0 0
        %1494 = vmatprep.subr.bf16.mxu0 0
        %1495 = vmatpush2.bf16.msra.mxu0 0
        %1496 = vmatprep.subr.bf16.mxu0 0
        %1497 = vmatpush2.bf16.msra.mxu0 0
        %1498 = vmatprep.subr.bf16.mxu0 0
        %1499 = vmatpush2.bf16.msra.mxu0 0
        %1500 = vmatprep.subr.bf16.mxu0 0
        %1501 = vmatpush2.bf16.msra.mxu0 0
        %1502 = vmatprep.mubr.bf16.mxu0 0
        %1503 = vmatmul.mubr.bf16.gmra.mxu0 %v1465
        %v1504 = vpop.f32.mrf.mxu0
        %v1505 = vadd.f32 0.0, %v1504
        %v1506 = vpop.f32.mrf.mxu0
        %v1507 = vpop.f32.mrf.mxu0
        %v1508 = vpop.f32.mrf.mxu0
        %1509 = vdwg.mxu0
        %1510 = vrot.lane.b32.xlu0 %v1106, 48
        %v1511 = vpop.permute.xlu0 %1510
        %v1513 = vsel %vm1216, %v1461, 0
        %v1516 = vsel %vm1246, %v1511, 0
        %1518 = vmatprep.subr.bf16.mxu0 0
        %1519 = vmatpush1.bf16.msra.mxu0 0
        %1520 = vmatprep.subr.bf16.mxu0 0
        %1521 = vmatpush1.bf16.msra.mxu0 0
        %1522 = vmatprep.subr.bf16.mxu0 0
        %1523 = vmatpush1.bf16.msra.mxu0 0
        %1524 = vmatprep.subr.bf16.mxu0 0
        %1525 = vmatpush1.bf16.msra.mxu0 0
        %1526 = vmatprep.subr.bf16.mxu0 0
        %1527 = vmatpush1.bf16.msra.mxu0 0
        %1528 = vmatprep.subr.bf16.mxu0 0
        %1529 = vmatpush1.bf16.msra.mxu0 0
        %1530 = vmatprep.subr.bf16.mxu0 0
        %1531 = vmatpush1.bf16.msra.mxu0 0
        %1532 = vmatprep.subr.bf16.mxu0 0
        %1533 = vmatpush1.bf16.msra.mxu0 %v1516
        %1534 = vmatprep.subr.bf16.mxu0 0
        %1535 = vmatpush2.bf16.msra.mxu0 0
        %1536 = vmatprep.subr.bf16.mxu0 0
        %1537 = vmatpush2.bf16.msra.mxu0 0
        %1538 = vmatprep.subr.bf16.mxu0 0
        %1539 = vmatpush2.bf16.msra.mxu0 0
        %1540 = vmatprep.subr.bf16.mxu0 0
        %1541 = vmatpush2.bf16.msra.mxu0 0
        %1542 = vmatprep.subr.bf16.mxu0 0
        %1543 = vmatpush2.bf16.msra.mxu0 0
        %1544 = vmatprep.subr.bf16.mxu0 0
        %1545 = vmatpush2.bf16.msra.mxu0 0
        %1546 = vmatprep.subr.bf16.mxu0 0
        %1547 = vmatpush2.bf16.msra.mxu0 0
        %1548 = vmatprep.subr.bf16.mxu0 0
        %1549 = vmatpush2.bf16.msra.mxu0 0
        %1550 = vmatprep.mubr.bf16.mxu0 0
        %1551 = vmatmul.mubr.bf16.gmra.mxu0 %v1513
        %v1552 = vpop.f32.mrf.mxu0
        %v1553 = vadd.f32 0.0, %v1552
        %v1554 = vpop.f32.mrf.mxu0
        %v1555 = vpop.f32.mrf.mxu0
        %v1556 = vpop.f32.mrf.mxu0
        %1557 = vdwg.mxu0
        %1560 = vrot.lane.b32.xlu0 %v1505, 16
        %v1561 = vpop.permute.xlu0 %1560
        %1562 = vrot.lane.b32.xlu0 %v1553, 16
        %v1563 = vpop.permute.xlu0 %1562
        %v1566 = vsel %vm1120, %v1285, %v1561
        %v1567 = vsel %vm1120, %v1333, %v1563
        %v1568 = vpack.c.bf16 %v1567, %v1566
        %v1569 = vld [vmem:[%s918] sm:$0xf]
        %v1570 = vld [vmem:[%s918 + $0x4] sm:$0xf]
        %v1571 = vld [vmem:[%s918 + $0x8] sm:$0xf]
        %v1572 = vld [vmem:[%s918 + $0xc] sm:$0xf]
        %v1573 = vld [vmem:[%s921] sm:$0x1]
        %v1575 = vlaneseq
        %v1576 = vshrl.u32 %v1575, 7
        %v1577 = vsub.s32 0, %v1576
        %v1578 = vrot.slane %v1573, %v1577
        %v1584 = vunpack.c.l.b16 %v1569
        %v1585 = vunpack.c.l.b16 %v1570
        %v1586 = vunpack.c.l.b16 %v1571
        %v1587 = vunpack.c.l.b16 %v1572
        %v1588 = vpack.c.b16 %v1585, %v1584
        %v1589 = vpack.c.b16 %v1587, %v1586
        %v1593 = vsel %vm1036, %v1568, 0
        %1595 = vmatprep.subr.bf16.mxu0 0
        %1596 = vmatpush1.bf16.msra.mxu0 0
        %1597 = vmatprep.subr.bf16.mxu0 0
        %1598 = vmatpush1.bf16.msra.mxu0 0
        %1599 = vmatprep.subr.bf16.mxu0 0
        %1600 = vmatpush1.bf16.msra.mxu0 0
        %1601 = vmatprep.subr.bf16.mxu0 0
        %1602 = vmatpush1.bf16.msra.mxu0 0
        %1603 = vmatprep.subr.bf16.mxu0 0
        %1604 = vmatpush1.bf16.msra.mxu0 0
        %1605 = vmatprep.subr.bf16.mxu0 0
        %1606 = vmatpush1.bf16.msra.mxu0 0
        %1607 = vmatprep.subr.bf16.mxu0 0
        %1608 = vmatpush1.bf16.msra.mxu0 %v1589
        %1609 = vmatprep.subr.bf16.mxu0 0
        %1610 = vmatpush1.bf16.msra.mxu0 %v1588
        %1611 = vmatprep.subr.bf16.mxu0 0
        %1612 = vmatpush2.bf16.msra.mxu0 0
        %1613 = vmatprep.subr.bf16.mxu0 0
        %1614 = vmatpush2.bf16.msra.mxu0 0
        %1615 = vmatprep.subr.bf16.mxu0 0
        %1616 = vmatpush2.bf16.msra.mxu0 0
        %1617 = vmatprep.subr.bf16.mxu0 0
        %1618 = vmatpush2.bf16.msra.mxu0 0
        %1619 = vmatprep.subr.bf16.mxu0 0
        %1620 = vmatpush2.bf16.msra.mxu0 0
        %1621 = vmatprep.subr.bf16.mxu0 0
        %1622 = vmatpush2.bf16.msra.mxu0 0
        %1623 = vmatprep.subr.bf16.mxu0 0
        %1624 = vmatpush2.bf16.msra.mxu0 0
        %1625 = vmatprep.subr.bf16.mxu0 0
        %1626 = vmatpush2.bf16.msra.mxu0 0
        %1627 = vmatprep.mubr.bf16.mxu0 0
        %1628 = vmatmul.mubr.bf16.gmra.mxu0 %v1593
        %v1629 = vpop.f32.mrf.mxu0
        %v1630 = vadd.f32 %v1578, %v1629
        %v1631 = vpop.f32.mrf.mxu0
        %v1632 = vpop.f32.mrf.mxu0
        %v1633 = vadd.f32 %v1578, %v1632
        %v1634 = vpop.f32.mrf.mxu0
        %1635 = vdwg.mxu0
        %v1636 = vadd.f32 %v1630, %v1010
        %v1637 = vadd.f32 %v1633, %v1011
        %v1638 = vld [vmem:[%s924] sm:$0x1]
        %v1639 = vld [vmem:[%s927] sm:$0x1]
        %v1640 = vsel %vm1036, %v1636, 0.0
        %1641 = vadd.xlane.f32.xlu0 %v1640
        %v1642 = vpop.xlane.xlu0 %1641
        %v1643 = vsel %vm1036, %v1637, 0.0
        %1644 = vadd.xlane.f32.xlu0 %v1643
        %v1645 = vpop.xlane.xlu0 %1644
        %v1646 = vrcp.pop 32.0
        %v1647 = vmul.f32 %v1642, %v1646
        %v1648 = vmul.f32 %v1645, %v1646
        %v1649 = vsub.f32 %v1636, %v1647
        %v1650 = vsub.f32 %v1637, %v1648
        %v1651 = vmul.f32 %v1649, %v1649
        %v1652 = vmul.f32 %v1650, %v1650
        %v1653 = vsel %vm1036, %v1651, 0.0
        %1654 = vadd.xlane.f32.xlu0 %v1653
        %v1655 = vpop.xlane.xlu0 %1654
        %v1656 = vsel %vm1036, %v1652, 0.0
        %1657 = vadd.xlane.f32.xlu0 %v1656
        %v1658 = vpop.xlane.xlu0 %1657
        %v1659 = vmul.f32 %v1655, %v1646
        %v1660 = vmul.f32 %v1658, %v1646
        %v1661 = vadd.f32 %v1659, 1e-12
        %v1662 = vadd.f32 %v1660, 1e-12
        %v1663 = vrsqrt.pop %v1661
        %v1664 = vrsqrt.pop %v1662
        %v1665 = vmul.f32 %v1649, %v1663
        %v1666 = vmul.f32 %v1650, %v1664
        %v1668 = vlaneseq
        %v1669 = vshrl.u32 %v1668, 7
        %v1670 = vsub.s32 0, %v1669
        %v1671 = vrot.slane %v1638, %v1670
        %v1673 = vmul.f32 %v1665, %v1671
        %v1674 = vmul.f32 %v1666, %v1671
        %v1676 = vlaneseq
        %v1677 = vshrl.u32 %v1676, 7
        %v1678 = vsub.s32 0, %v1677
        %v1679 = vrot.slane %v1639, %v1678
        %v1681 = vadd.f32 %v1673, %v1679
        %v1682 = vadd.f32 %v1674, %v1679
        %v1683 = vpack.c.bf16 %v1682, %v1681
        %v1684 = vld [vmem:[%s932] sm:$0xf]
        %v1685 = vld [vmem:[%s932 + $0x4] sm:$0xf]
        %v1686 = vld [vmem:[%s932 + $0x8] sm:$0xf]
        %v1687 = vld [vmem:[%s932 + $0xc] sm:$0xf]
        %v1688 = vld [vmem:[%s935] sm:$0x1]
        %v1690 = vlaneseq
        %v1691 = vshrl.u32 %v1690, 7
        %v1692 = vsub.s32 0, %v1691
        %v1693 = vrot.slane %v1688, %v1692
        %v1699 = vunpack.c.l.b16 %v1684
        %v1700 = vunpack.c.l.b16 %v1685
        %v1701 = vunpack.c.l.b16 %v1686
        %v1702 = vunpack.c.l.b16 %v1687
        %v1703 = vpack.c.b16 %v1700, %v1699
        %v1704 = vpack.c.b16 %v1702, %v1701
        %v1708 = vsel %vm1036, %v1683, 0
        %1710 = vmatprep.subr.bf16.mxu0 0
        %1711 = vmatpush1.bf16.msra.mxu0 0
        %1712 = vmatprep.subr.bf16.mxu0 0
        %1713 = vmatpush1.bf16.msra.mxu0 0
        %1714 = vmatprep.subr.bf16.mxu0 0
        %1715 = vmatpush1.bf16.msra.mxu0 0
        %1716 = vmatprep.subr.bf16.mxu0 0
        %1717 = vmatpush1.bf16.msra.mxu0 0
        %1718 = vmatprep.subr.bf16.mxu0 0
        %1719 = vmatpush1.bf16.msra.mxu0 0
        %1720 = vmatprep.subr.bf16.mxu0 0
        %1721 = vmatpush1.bf16.msra.mxu0 0
        %1722 = vmatprep.subr.bf16.mxu0 0
        %1723 = vmatpush1.bf16.msra.mxu0 %v1704
        %1724 = vmatprep.subr.bf16.mxu0 0
        %1725 = vmatpush1.bf16.msra.mxu0 %v1703
        %1726 = vmatprep.subr.bf16.mxu0 0
        %1727 = vmatpush2.bf16.msra.mxu0 0
        %1728 = vmatprep.subr.bf16.mxu0 0
        %1729 = vmatpush2.bf16.msra.mxu0 0
        %1730 = vmatprep.subr.bf16.mxu0 0
        %1731 = vmatpush2.bf16.msra.mxu0 0
        %1732 = vmatprep.subr.bf16.mxu0 0
        %1733 = vmatpush2.bf16.msra.mxu0 0
        %1734 = vmatprep.subr.bf16.mxu0 0
        %1735 = vmatpush2.bf16.msra.mxu0 0
        %1736 = vmatprep.subr.bf16.mxu0 0
        %1737 = vmatpush2.bf16.msra.mxu0 0
        %1738 = vmatprep.subr.bf16.mxu0 0
        %1739 = vmatpush2.bf16.msra.mxu0 0
        %1740 = vmatprep.subr.bf16.mxu0 0
        %1741 = vmatpush2.bf16.msra.mxu0 0
        %1742 = vmatprep.mubr.bf16.mxu0 0
        %1743 = vmatmul.mubr.bf16.gmra.mxu0 %v1708
        %v1744 = vpop.f32.mrf.mxu0
        %v1745 = vadd.f32 %v1693, %v1744
        %v1746 = vpop.f32.mrf.mxu0
        %v1747 = vpop.f32.mrf.mxu0
        %v1748 = vadd.f32 %v1693, %v1747
        %v1749 = vpop.f32.mrf.mxu0
        %1750 = vdwg.mxu0
        %v1751 = vmul.f32 %v1745, 0.5
        %v1752 = vmul.f32 %v1748, 0.5
        %v1753 = vmul.f32 %v1745, 0.044715
        %v1754 = vmul.f32 %v1748, 0.044715
        %v1755 = vmul.f32 %v1753, %v1745
        %v1756 = vmul.f32 %v1754, %v1748
        %v1757 = vmul.f32 %v1755, %v1745
        %v1758 = vmul.f32 %v1756, %v1748
        %v1759 = vadd.f32 %v1745, %v1757
        %v1760 = vadd.f32 %v1748, %v1758
        %v1761 = vmul.f32 %v1759, 0.7978846
        %v1762 = vmul.f32 %v1760, 0.7978846
        %v1763 = vtanh.pop %v1761
        %v1764 = vtanh.pop %v1762
        %v1765 = vadd.f32 %v1763, 1.0
        %v1766 = vadd.f32 %v1764, 1.0
        %v1767 = vmul.f32 %v1751, %v1765
        %v1768 = vmul.f32 %v1752, %v1766
        %v1769 = vpack.c.bf16 %v1768, %v1767
        %v1770 = vld [vmem:[%s940] sm:$0xf]
        %v1771 = vld [vmem:[%s940 + $0x4] sm:$0xf]
        %v1772 = vld [vmem:[%s940 + $0x8] sm:$0xf]
        %v1773 = vld [vmem:[%s940 + $0xc] sm:$0xf]
        %v1774 = vld [vmem:[%s940 + $0x10] sm:$0xf]
        %v1775 = vld [vmem:[%s940 + $0x14] sm:$0xf]
        %v1776 = vld [vmem:[%s940 + $0x18] sm:$0xf]
        %v1777 = vld [vmem:[%s940 + $0x1c] sm:$0xf]
        %v1778 = vld [vmem:[%s943] sm:$0x1]
        %v1780 = vlaneseq
        %v1781 = vshrl.u32 %v1780, 7
        %v1782 = vsub.s32 0, %v1781
        %v1783 = vrot.slane %v1778, %v1782
        %v1793 = vunpack.c.l.b16 %v1770
        %v1794 = vunpack.c.l.b16 %v1771
        %v1795 = vunpack.c.l.b16 %v1772
        %v1796 = vunpack.c.l.b16 %v1773
        %v1797 = vunpack.c.l.b16 %v1774
        %v1798 = vunpack.c.l.b16 %v1775
        %v1799 = vunpack.c.l.b16 %v1776
        %v1800 = vunpack.c.l.b16 %v1777
        %v1801 = vpack.c.b16 %v1794, %v1793
        %v1802 = vpack.c.b16 %v1796, %v1795
        %v1803 = vpack.c.b16 %v1798, %v1797
        %v1804 = vpack.c.b16 %v1800, %v1799
        %vm1809 = vcmask 523264
        %v1811 = vsel %vm1809, %v1769, 0
        %1813 = vmatprep.subr.bf16.mxu0 0
        %1814 = vmatpush1.bf16.msra.mxu0 0
        %1815 = vmatprep.subr.bf16.mxu0 0
        %1816 = vmatpush1.bf16.msra.mxu0 0
        %1817 = vmatprep.subr.bf16.mxu0 0
        %1818 = vmatpush1.bf16.msra.mxu0 0
        %1819 = vmatprep.subr.bf16.mxu0 0
        %1820 = vmatpush1.bf16.msra.mxu0 0
        %1821 = vmatprep.subr.bf16.mxu0 0
        %1822 = vmatpush1.bf16.msra.mxu0 %v1804
        %1823 = vmatprep.subr.bf16.mxu0 0
        %1824 = vmatpush1.bf16.msra.mxu0 %v1803
        %1825 = vmatprep.subr.bf16.mxu0 0
        %1826 = vmatpush1.bf16.msra.mxu0 %v1802
        %1827 = vmatprep.subr.bf16.mxu0 0
        %1828 = vmatpush1.bf16.msra.mxu0 %v1801
        %1829 = vmatprep.subr.bf16.mxu0 0
        %1830 = vmatpush2.bf16.msra.mxu0 0
        %1831 = vmatprep.subr.bf16.mxu0 0
        %1832 = vmatpush2.bf16.msra.mxu0 0
        %1833 = vmatprep.subr.bf16.mxu0 0
        %1834 = vmatpush2.bf16.msra.mxu0 0
        %1835 = vmatprep.subr.bf16.mxu0 0
        %1836 = vmatpush2.bf16.msra.mxu0 0
        %1837 = vmatprep.subr.bf16.mxu0 0
        %1838 = vmatpush2.bf16.msra.mxu0 0
        %1839 = vmatprep.subr.bf16.mxu0 0
        %1840 = vmatpush2.bf16.msra.mxu0 0
        %1841 = vmatprep.subr.bf16.mxu0 0
        %1842 = vmatpush2.bf16.msra.mxu0 0
        %1843 = vmatprep.subr.bf16.mxu0 0
        %1844 = vmatpush2.bf16.msra.mxu0 0
        %1845 = vmatprep.mubr.bf16.mxu0 0
        %1846 = vmatmul.mubr.bf16.gmra.mxu0 %v1811
        %v1847 = vpop.f32.mrf.mxu0
        %v1848 = vadd.f32 %v1783, %v1847
        %v1849 = vpop.f32.mrf.mxu0
        %v1850 = vpop.f32.mrf.mxu0
        %v1851 = vadd.f32 %v1783, %v1850
        %v1852 = vpop.f32.mrf.mxu0
        %1853 = vdwg.mxu0
        %v1854 = vadd.f32 %v1848, %v1681
        %v1855 = vadd.f32 %v1851, %v1682
        %v1856 = vld [vmem:[%s946] sm:$0x1]
        %v1857 = vld [vmem:[%s949] sm:$0x1]
        %v1858 = vsel %vm1036, %v1854, 0.0
        %1859 = vadd.xlane.f32.xlu0 %v1858
        %v1860 = vpop.xlane.xlu0 %1859
        %v1861 = vsel %vm1036, %v1855, 0.0
        %1862 = vadd.xlane.f32.xlu0 %v1861
        %v1863 = vpop.xlane.xlu0 %1862
        %v1864 = vmul.f32 %v1860, %v1646
        %v1865 = vmul.f32 %v1863, %v1646
        %v1866 = vsub.f32 %v1854, %v1864
        %v1867 = vsub.f32 %v1855, %v1865
        %v1868 = vmul.f32 %v1866, %v1866
        %v1869 = vmul.f32 %v1867, %v1867
        %v1870 = vsel %vm1036, %v1868, 0.0
        %1871 = vadd.xlane.f32.xlu0 %v1870
        %v1872 = vpop.xlane.xlu0 %1871
        %v1873 = vsel %vm1036, %v1869, 0.0
        %1874 = vadd.xlane.f32.xlu0 %v1873
        %v1875 = vpop.xlane.xlu0 %1874
        %v1876 = vmul.f32 %v1872, %v1646
        %v1877 = vmul.f32 %v1875, %v1646
        %v1878 = vadd.f32 %v1876, 1e-12
        %v1879 = vadd.f32 %v1877, 1e-12
        %v1880 = vrsqrt.pop %v1878
        %v1881 = vrsqrt.pop %v1879
        %v1882 = vmul.f32 %v1866, %v1880
        %v1883 = vmul.f32 %v1867, %v1881
        %v1885 = vlaneseq
        %v1886 = vshrl.u32 %v1885, 7
        %v1887 = vsub.s32 0, %v1886
        %v1888 = vrot.slane %v1856, %v1887
        %v1890 = vmul.f32 %v1882, %v1888
        %v1891 = vmul.f32 %v1883, %v1888
        %v1893 = vlaneseq
        %v1894 = vshrl.u32 %v1893, 7
        %v1895 = vsub.s32 0, %v1894
        %v1896 = vrot.slane %v1857, %v1895
        %v1898 = vadd.f32 %v1890, %v1896
        %v1899 = vadd.f32 %v1891, %v1896
        %1900 = vst.msk [vmem:[#allocation2] sm:$0xff] %vm1036, %v1898
        %1901 = vst.msk [vmem:[#allocation2 + $0x8] sm:$0xff] %vm1036, %v1899
        %p1902 = scmp.eq.s32.totalorder %s38, 1
        // Predicated region
        $region129: #{pubmedbert_classifier_forward.1} parent=123 // pred_check
          %p1903 = pneg %p1902
        $region130: #{pubmedbert_classifier_forward.1} parent=123 // pred_check_branch
          %1905 = sbr.rel (%p1903) target = $region132
        $region131: #{pubmedbert_classifier_forward.1} parent=123 // pred_region
          %v1906 = vpack.c.bf16 %v1898, %v1898
          %v1907 = vpack.c.bf16 %v1899, %v1899
          %v1908 = vld [vmem:[%s5] sm:$0xf]
          %v1909 = vld [vmem:[%s5 + $0x4] sm:$0xf]
          %v1910 = vld [vmem:[%s5 + $0x8] sm:$0xf]
          %v1911 = vld [vmem:[%s5 + $0xc] sm:$0xf]
          %v1912 = vld [vmem:[%s6] sm:$0x1]
          %v1914 = vlaneseq
          %v1915 = vshrl.u32 %v1914, 7
          %v1916 = vsub.s32 0, %v1915
          %v1917 = vrot.slane %v1912, %v1916
          %v1921 = vunpack.c.l.b16 %v1906
          %v1922 = vunpack.c.l.b16 %v1907
          %v1923 = vrot.slane %v1922, 7
          %vm1924 = vcmask 1041409
          %v1925 = vsel %vm1924, %v1923, %v1921
          %v1926 = vpack.c.b16 %v1925, %v1925
          %v1931 = vunpack.c.l.b16 %v1908
          %v1932 = vunpack.c.l.b16 %v1909
          %v1933 = vunpack.c.l.b16 %v1910
          %v1934 = vunpack.c.l.b16 %v1911
          %v1935 = vpack.c.b16 %v1932, %v1931
          %v1936 = vpack.c.b16 %v1934, %v1933
          %v1940 = vsel %vm1036, %v1926, 0
          %1942 = vmatprep.subr.bf16.mxu0 0
          %1943 = vmatpush1.bf16.msra.mxu0 0
          %1944 = vmatprep.subr.bf16.mxu0 0
          %1945 = vmatpush1.bf16.msra.mxu0 0
          %1946 = vmatprep.subr.bf16.mxu0 0
          %1947 = vmatpush1.bf16.msra.mxu0 0
          %1948 = vmatprep.subr.bf16.mxu0 0
          %1949 = vmatpush1.bf16.msra.mxu0 0
          %1950 = vmatprep.subr.bf16.mxu0 0
          %1951 = vmatpush1.bf16.msra.mxu0 0
          %1952 = vmatprep.subr.bf16.mxu0 0
          %1953 = vmatpush1.bf16.msra.mxu0 0
          %1954 = vmatprep.subr.bf16.mxu0 0
          %1955 = vmatpush1.bf16.msra.mxu0 %v1936
          %1956 = vmatprep.subr.bf16.mxu0 0
          %1957 = vmatpush1.bf16.msra.mxu0 %v1935
          %1958 = vmatprep.subr.bf16.mxu0 0
          %1959 = vmatpush2.bf16.msra.mxu0 0
          %1960 = vmatprep.subr.bf16.mxu0 0
          %1961 = vmatpush2.bf16.msra.mxu0 0
          %1962 = vmatprep.subr.bf16.mxu0 0
          %1963 = vmatpush2.bf16.msra.mxu0 0
          %1964 = vmatprep.subr.bf16.mxu0 0
          %1965 = vmatpush2.bf16.msra.mxu0 0
          %1966 = vmatprep.subr.bf16.mxu0 0
          %1967 = vmatpush2.bf16.msra.mxu0 0
          %1968 = vmatprep.subr.bf16.mxu0 0
          %1969 = vmatpush2.bf16.msra.mxu0 0
          %1970 = vmatprep.subr.bf16.mxu0 0
          %1971 = vmatpush2.bf16.msra.mxu0 0
          %1972 = vmatprep.subr.bf16.mxu0 0
          %1973 = vmatpush2.bf16.msra.mxu0 0
          %1974 = vmatprep.mubr.bf16.mxu0 0
          %1975 = vmatmul.mubr.bf16.gmra.mxu0 %v1940
          %v1976 = vpop.f32.mrf.mxu0
          %v1977 = vadd.f32 %v1917, %v1976
          %v1978 = vpop.f32.mrf.mxu0
          %v1979 = vpop.f32.mrf.mxu0
          %v1980 = vpop.f32.mrf.mxu0
          %1981 = vdwg.mxu0
          %v1982 = vtanh.pop %v1977
          %v1983 = vld [vmem:[%s4] sm:$0x3]
          %v1984 = vpack.c.bf16 %v1983, %v1983
          %v1985 = vld [vmem:[%s7] sm:$0xf]
          %v1986 = vld [vmem:[%s7 + $0x4] sm:$0x1]
          %v1987 = vld [vmem:[%s8] sm:$0x1]
          %v1989 = vlaneseq
          %v1990 = vshrl.u32 %v1989, 7
          %v1991 = vsub.s32 0, %v1990
          %v1992 = vrot.slane %v1987, %v1991
          %v1996 = vunpack.c.l.b16 %v1985
          %v1997 = vunpack.c.l.b16 %v1986
          %v1998 = vpack.c.b16 %v1997, %v1996
          %vm1999 = vcmask 80896
          %v2001 = vsel %vm1999, %v1984, 0
          %vm2003 = vcmask 1044480
          %v2005 = vsel %vm2003, %v1998, 0
          %2007 = vmatprep.subr.bf16.mxu0 0
          %2008 = vmatpush1.bf16.msra.mxu0 0
          %2009 = vmatprep.subr.bf16.mxu0 0
          %2010 = vmatpush1.bf16.msra.mxu0 0
          %2011 = vmatprep.subr.bf16.mxu0 0
          %2012 = vmatpush1.bf16.msra.mxu0 0
          %2013 = vmatprep.subr.bf16.mxu0 0
          %2014 = vmatpush1.bf16.msra.mxu0 0
          %2015 = vmatprep.subr.bf16.mxu0 0
          %2016 = vmatpush1.bf16.msra.mxu0 0
          %2017 = vmatprep.subr.bf16.mxu0 0
          %2018 = vmatpush1.bf16.msra.mxu0 0
          %2019 = vmatprep.subr.bf16.mxu0 0
          %2020 = vmatpush1.bf16.msra.mxu0 0
          %2021 = vmatprep.subr.bf16.mxu0 0
          %2022 = vmatpush1.bf16.msra.mxu0 %v2005
          %2023 = vmatprep.subr.bf16.mxu0 0
          %2024 = vmatpush2.bf16.msra.mxu0 0
          %2025 = vmatprep.subr.bf16.mxu0 0
          %2026 = vmatpush2.bf16.msra.mxu0 0
          %2027 = vmatprep.subr.bf16.mxu0 0
          %2028 = vmatpush2.bf16.msra.mxu0 0
          %2029 = vmatprep.subr.bf16.mxu0 0
          %2030 = vmatpush2.bf16.msra.mxu0 0
          %2031 = vmatprep.subr.bf16.mxu0 0
          %2032 = vmatpush2.bf16.msra.mxu0 0
          %2033 = vmatprep.subr.bf16.mxu0 0
          %2034 = vmatpush2.bf16.msra.mxu0 0
          %2035 = vmatprep.subr.bf16.mxu0 0
          %2036 = vmatpush2.bf16.msra.mxu0 0
          %2037 = vmatprep.subr.bf16.mxu0 0
          %2038 = vmatpush2.bf16.msra.mxu0 0
          %2039 = vmatprep.mubr.bf16.mxu0 0
          %2040 = vmatmul.mubr.bf16.gmra.mxu0 %v2001
          %v2041 = vpop.f32.mrf.mxu0
          %v2042 = vadd.f32 %v1992, %v2041
          %v2043 = vpop.f32.mrf.mxu0
          %v2044 = vpop.f32.mrf.mxu0
          %v2045 = vpop.f32.mrf.mxu0
          %2046 = vdwg.mxu0
          %v2047 = vmax.f32 %v2042, 0.0
          %v2048 = vpack.c.bf16 %v1982, %v1982
          %v2049 = vld [vmem:[%s9] sm:$0xff]
          %v2050 = vld [vmem:[%s9 + $0x8] sm:$0xff]
          %v2051 = vld [vmem:[%s9 + $0x10] sm:$0xff]
          %v2052 = vld [vmem:[%s9 + $0x18] sm:$0xff]
          %v2053 = vpack.c.bf16 %v2047, %v2047
          %v2054 = vld [vmem:[%s10] sm:$0xff]
          %v2055 = vld [vmem:[%s10 + $0x8] sm:$0xff]
          %v2056 = vld [vmem:[%s10 + $0x10] sm:$0xff]
          %v2057 = vld [vmem:[%s10 + $0x18] sm:$0xff]
          %v2058 = vld [vmem:[%s10 + $0x20] sm:$0xff]
          %v2059 = vld [vmem:[%s10 + $0x28] sm:$0xff]
          %v2066 = vunpack.c.l.b16 %v2054
          %v2067 = vunpack.c.h.b16 %v2054
          %v2068 = vunpack.c.l.b16 %v2055
          %v2069 = vunpack.c.h.b16 %v2055
          %v2070 = vunpack.c.l.b16 %v2056
          %v2071 = vunpack.c.h.b16 %v2056
          %v2072 = vunpack.c.l.b16 %v2057
          %v2073 = vunpack.c.h.b16 %v2057
          %v2074 = vunpack.c.l.b16 %v2058
          %v2075 = vunpack.c.h.b16 %v2058
          %v2076 = vunpack.c.l.b16 %v2059
          %v2077 = vunpack.c.h.b16 %v2059
          %v2078 = vpack.c.b16 %v2068, %v2066
          %v2079 = vpack.c.b16 %v2069, %v2067
          %v2080 = vpack.c.b16 %v2072, %v2070
          %v2081 = vpack.c.b16 %v2073, %v2071
          %v2082 = vpack.c.b16 %v2076, %v2074
          %v2083 = vpack.c.b16 %v2077, %v2075
          %vm2090 = vcmask 392192
          %v2092 = vsel %vm2090, %v2053, 0
          %2094 = vmatprep.subr.bf16.mxu0 0
          %2095 = vmatpush1.bf16.msra.mxu0 0
          %2096 = vmatprep.subr.bf16.mxu0 0
          %2097 = vmatpush1.bf16.msra.mxu0 0
          %2098 = vmatprep.subr.bf16.mxu0 0
          %2099 = vmatpush1.bf16.msra.mxu0 0
          %2100 = vmatprep.subr.bf16.mxu0 0
          %2101 = vmatpush1.bf16.msra.mxu0 0
          %2102 = vmatprep.subr.bf16.mxu0 0
          %2103 = vmatpush1.bf16.msra.mxu0 0
          %2104 = vmatprep.subr.bf16.mxu0 %v2083
          %2105 = vmatpush1.bf16.msra.mxu0 %v2082
          %2106 = vmatprep.subr.bf16.mxu0 %v2081
          %2107 = vmatpush1.bf16.msra.mxu0 %v2080
          %2108 = vmatprep.subr.bf16.mxu0 %v2079
          %2109 = vmatpush1.bf16.msra.mxu0 %v2078
          %2110 = vmatprep.subr.bf16.mxu0 0
          %2111 = vmatpush2.bf16.msra.mxu0 0
          %2112 = vmatprep.subr.bf16.mxu0 0
          %2113 = vmatpush2.bf16.msra.mxu0 0
          %2114 = vmatprep.subr.bf16.mxu0 0
          %2115 = vmatpush2.bf16.msra.mxu0 0
          %2116 = vmatprep.subr.bf16.mxu0 0
          %2117 = vmatpush2.bf16.msra.mxu0 0
          %2118 = vmatprep.subr.bf16.mxu0 0
          %2119 = vmatpush2.bf16.msra.mxu0 0
          %2120 = vmatprep.subr.bf16.mxu0 0
          %2121 = vmatpush2.bf16.msra.mxu0 0
          %2122 = vmatprep.subr.bf16.mxu0 0
          %2123 = vmatpush2.bf16.msra.mxu0 0
          %2124 = vmatprep.subr.bf16.mxu0 0
          %2125 = vmatpush2.bf16.msra.mxu0 0
          %2126 = vmatprep.mubr.bf16.mxu0 0
          %2127 = vmatmul.mubr.bf16.gmra.mxu0 %v2092
          %v2128 = vpop.f32.mrf.mxu0
          %v2129 = vadd.f32 0.0, %v2128
          %v2130 = vpop.f32.mrf.mxu0
          %v2131 = vadd.f32 0.0, %v2130
          %v2132 = vpop.f32.mrf.mxu0
          %v2133 = vpop.f32.mrf.mxu0
          %2134 = vdwg.mxu0
          %v2139 = vunpack.c.l.b16 %v2049
          %v2140 = vunpack.c.h.b16 %v2049
          %v2141 = vunpack.c.l.b16 %v2050
          %v2142 = vunpack.c.h.b16 %v2050
          %v2143 = vunpack.c.l.b16 %v2051
          %v2144 = vunpack.c.h.b16 %v2051
          %v2145 = vunpack.c.l.b16 %v2052
          %v2146 = vunpack.c.h.b16 %v2052
          %v2147 = vpack.c.b16 %v2141, %v2139
          %v2148 = vpack.c.b16 %v2142, %v2140
          %v2149 = vpack.c.b16 %v2145, %v2143
          %v2150 = vpack.c.b16 %v2146, %v2144
          %v2156 = vsel %vm1036, %v2048, 0
          %2158 = vmatprep.subr.bf16.mxu0 0
          %2159 = vmatpush1.bf16.msra.mxu0 0
          %2160 = vmatprep.subr.bf16.mxu0 0
          %2161 = vmatpush1.bf16.msra.mxu0 0
          %2162 = vmatprep.subr.bf16.mxu0 0
          %2163 = vmatpush1.bf16.msra.mxu0 0
          %2164 = vmatprep.subr.bf16.mxu0 0
          %2165 = vmatpush1.bf16.msra.mxu0 0
          %2166 = vmatprep.subr.bf16.mxu0 0
          %2167 = vmatpush1.bf16.msra.mxu0 0
          %2168 = vmatprep.subr.bf16.mxu0 0
          %2169 = vmatpush1.bf16.msra.mxu0 0
          %2170 = vmatprep.subr.bf16.mxu0 %v2150
          %2171 = vmatpush1.bf16.msra.mxu0 %v2149
          %2172 = vmatprep.subr.bf16.mxu0 %v2148
          %2173 = vmatpush1.bf16.msra.mxu0 %v2147
          %2174 = vmatprep.subr.bf16.mxu0 0
          %2175 = vmatpush2.bf16.msra.mxu0 0
          %2176 = vmatprep.subr.bf16.mxu0 0
          %2177 = vmatpush2.bf16.msra.mxu0 0
          %2178 = vmatprep.subr.bf16.mxu0 0
          %2179 = vmatpush2.bf16.msra.mxu0 0
          %2180 = vmatprep.subr.bf16.mxu0 0
          %2181 = vmatpush2.bf16.msra.mxu0 0
          %2182 = vmatprep.subr.bf16.mxu0 0
          %2183 = vmatpush2.bf16.msra.mxu0 0
          %2184 = vmatprep.subr.bf16.mxu0 0
          %2185 = vmatpush2.bf16.msra.mxu0 0
          %2186 = vmatprep.subr.bf16.mxu0 0
          %2187 = vmatpush2.bf16.msra.mxu0 0
          %2188 = vmatprep.subr.bf16.mxu0 0
          %2189 = vmatpush2.bf16.msra.mxu0 0
          %2190 = vmatprep.mubr.bf16.mxu0 0
          %2191 = vmatmul.mubr.bf16.gmra.mxu0 %v2156
          %v2192 = vpop.f32.mrf.mxu0
          %v2193 = vadd.f32 %v2129, %v2192
          %v2194 = vpop.f32.mrf.mxu0
          %v2195 = vadd.f32 %v2131, %v2194
          %v2196 = vpop.f32.mrf.mxu0
          %v2197 = vpop.f32.mrf.mxu0
          %2198 = vdwg.mxu0
          %v2199 = vld [vmem:[%s11] sm:$0x3]
          %v2201 = vlaneseq
          %v2202 = vshrl.u32 %v2201, 7
          %v2203 = vsub.s32 0, %v2202
          %v2204 = vrot.slane %v2199, %v2203
          %v2205 = vlaneseq
          %v2206 = vshrl.u32 %v2205, 7
          %v2207 = vsub.s32 1, %v2206
          %v2208 = vrot.slane %v2199, %v2207
          %v2211 = vadd.f32 %v2193, %v2204
          %v2212 = vadd.f32 %v2195, %v2208
          %v2213 = vmax.f32 %v2211, 0.0
          %v2214 = vmax.f32 %v2212, 0.0
          %v2215 = vpack.c.bf16 %v2213, %v2213
          %v2216 = vpack.c.bf16 %v2214, %v2214
          %v2217 = vld [vmem:[%s12] sm:$0xf]
          %v2218 = vld [vmem:[%s12 + $0x4] sm:$0xf]
          %v2219 = vld [vmem:[%s12 + $0x8] sm:$0xf]
          %v2220 = vld [vmem:[%s12 + $0xc] sm:$0xf]
          %v2221 = vld [vmem:[%s12 + $0x10] sm:$0xf]
          %v2222 = vld [vmem:[%s12 + $0x14] sm:$0xf]
          %v2223 = vld [vmem:[%s12 + $0x18] sm:$0xf]
          %v2224 = vld [vmem:[%s12 + $0x1c] sm:$0xf]
          %v2225 = vld [vmem:[%s12 + $0x20] sm:$0xf]
          %v2226 = vld [vmem:[%s12 + $0x24] sm:$0xf]
          %v2227 = vld [vmem:[%s12 + $0x28] sm:$0xf]
          %v2228 = vld [vmem:[%s12 + $0x2c] sm:$0xf]
          %v2229 = vld [vmem:[%s12 + $0x30] sm:$0xf]
          %v2230 = vld [vmem:[%s12 + $0x34] sm:$0xf]
          %v2231 = vld [vmem:[%s12 + $0x38] sm:$0xf]
          %v2232 = vld [vmem:[%s12 + $0x3c] sm:$0xf]
          %v2233 = vld [vmem:[%s12 + $0x40] sm:$0xf]
          %v2234 = vld [vmem:[%s12 + $0x44] sm:$0xf]
          %v2235 = vld [vmem:[%s12 + $0x48] sm:$0xf]
          %v2236 = vld [vmem:[%s12 + $0x4c] sm:$0xf]
          %v2237 = vld [vmem:[%s12 + $0x50] sm:$0xf]
          %v2238 = vld [vmem:[%s12 + $0x54] sm:$0xf]
          %v2239 = vld [vmem:[%s12 + $0x58] sm:$0xf]
          %v2240 = vld [vmem:[%s12 + $0x5c] sm:$0xf]
          %v2241 = vld [vmem:[%s13] sm:$0x1]
          %v2243 = vlaneseq
          %v2244 = vshrl.u32 %v2243, 7
          %v2245 = vsub.s32 0, %v2244
          %v2246 = vrot.slane %v2241, %v2245
          %v2272 = vunpack.c.l.b16 %v2217
          %v2273 = vunpack.c.l.b16 %v2218
          %v2274 = vunpack.c.l.b16 %v2219
          %v2275 = vunpack.c.l.b16 %v2220
          %v2276 = vunpack.c.l.b16 %v2221
          %v2277 = vunpack.c.l.b16 %v2222
          %v2278 = vunpack.c.l.b16 %v2223
          %v2279 = vunpack.c.l.b16 %v2224
          %v2280 = vunpack.c.l.b16 %v2225
          %v2281 = vunpack.c.l.b16 %v2226
          %v2282 = vunpack.c.l.b16 %v2227
          %v2283 = vunpack.c.l.b16 %v2228
          %v2284 = vunpack.c.l.b16 %v2229
          %v2285 = vunpack.c.l.b16 %v2230
          %v2286 = vunpack.c.l.b16 %v2231
          %v2287 = vunpack.c.l.b16 %v2232
          %v2288 = vunpack.c.l.b16 %v2233
          %v2289 = vunpack.c.l.b16 %v2234
          %v2290 = vunpack.c.l.b16 %v2235
          %v2291 = vunpack.c.l.b16 %v2236
          %v2292 = vunpack.c.l.b16 %v2237
          %v2293 = vunpack.c.l.b16 %v2238
          %v2294 = vunpack.c.l.b16 %v2239
          %v2295 = vunpack.c.l.b16 %v2240
          %v2296 = vpack.c.b16 %v2273, %v2272
          %v2297 = vpack.c.b16 %v2275, %v2274
          %v2298 = vpack.c.b16 %v2277, %v2276
          %v2299 = vpack.c.b16 %v2279, %v2278
          %v2300 = vpack.c.b16 %v2281, %v2280
          %v2301 = vpack.c.b16 %v2283, %v2282
          %v2302 = vpack.c.b16 %v2285, %v2284
          %v2303 = vpack.c.b16 %v2287, %v2286
          %v2304 = vpack.c.b16 %v2289, %v2288
          %v2305 = vpack.c.b16 %v2291, %v2290
          %v2306 = vpack.c.b16 %v2293, %v2292
          %v2307 = vpack.c.b16 %v2295, %v2294
          %v2321 = vsel %vm1809, %v2216, 0
          %2323 = vmatprep.subr.bf16.mxu0 0
          %2324 = vmatpush1.bf16.msra.mxu0 %v2303
          %2325 = vmatprep.subr.bf16.mxu0 0
          %2326 = vmatpush1.bf16.msra.mxu0 %v2302
          %2327 = vmatprep.subr.bf16.mxu0 0
          %2328 = vmatpush1.bf16.msra.mxu0 %v2301
          %2329 = vmatprep.subr.bf16.mxu0 0
          %2330 = vmatpush1.bf16.msra.mxu0 %v2300
          %2331 = vmatprep.subr.bf16.mxu0 0
          %2332 = vmatpush1.bf16.msra.mxu0 %v2299
          %2333 = vmatprep.subr.bf16.mxu0 0
          %2334 = vmatpush1.bf16.msra.mxu0 %v2298
          %2335 = vmatprep.subr.bf16.mxu0 0
          %2336 = vmatpush1.bf16.msra.mxu0 %v2297
          %2337 = vmatprep.subr.bf16.mxu0 0
          %2338 = vmatpush1.bf16.msra.mxu0 %v2296
          %2339 = vmatprep.subr.bf16.mxu0 0
          %2340 = vmatpush2.bf16.msra.mxu0 0
          %2341 = vmatprep.subr.bf16.mxu0 0
          %2342 = vmatpush2.bf16.msra.mxu0 0
          %2343 = vmatprep.subr.bf16.mxu0 0
          %2344 = vmatpush2.bf16.msra.mxu0 0
          %2345 = vmatprep.subr.bf16.mxu0 0
          %2346 = vmatpush2.bf16.msra.mxu0 0
          %2347 = vmatprep.subr.bf16.mxu0 0
          %2348 = vmatpush2.bf16.msra.mxu0 %v2307
          %2349 = vmatprep.subr.bf16.mxu0 0
          %2350 = vmatpush2.bf16.msra.mxu0 %v2306
          %2351 = vmatprep.subr.bf16.mxu0 0
          %2352 = vmatpush2.bf16.msra.mxu0 %v2305
          %2353 = vmatprep.subr.bf16.mxu0 0
          %2354 = vmatpush2.bf16.msra.mxu0 %v2304
          %2355 = vmatprep.mubr.bf16.mxu0 %v2321
          %2356 = vmatmul.mubr.bf16.gmra.mxu0 %v2215
          %v2357 = vpop.f32.mrf.mxu0
          %v2358 = vadd.f32 %v2246, %v2357
          %v2359 = vpop.f32.mrf.mxu0
          %v2360 = vpop.f32.mrf.mxu0
          %v2361 = vpop.f32.mrf.mxu0
          %2362 = vdwg.mxu0
          %2363 = vst [vmem:[#allocation4] sm:$0x3] %v2358
        $region132: #{pubmedbert_classifier_forward.1} parent=123 // pred_fallthru
          _
        // Predicated region
        $region133: #{pubmedbert_classifier_forward.1} parent=123 // pred_check
          %p2364 = pneg %p657
        $region134: #{pubmedbert_classifier_forward.1} parent=123 // pred_check_branch
          %2366 = sbr.rel (%p2364) target = $region136
        $region135: #{pubmedbert_classifier_forward.1} parent=123 // pred_region
          %s2368 = ssub.s32 32, 32
          %2369 = vsyncadd [#allocation5], %s2368
          %s2371 = sshll.u32 [#allocation4], 4
          %s2372 = int_to_ptr.vmem [resolvable:$true] %s2371
          %2374 = dma.vmem_to_hbm [thread:$0]  %s2372, 32, %s26, [#allocation5]
        $region136: #{pubmedbert_classifier_forward.1} parent=123 // pred_fallthru
          _
        // Predicated region
        $region137: #{pubmedbert_classifier_forward.1} parent=123 // pred_check
          %p2375 = pneg %p657
        $region138: #{pubmedbert_classifier_forward.1} parent=123 // pred_check_branch
          %2377 = sbr.rel (%p2375) target = $region140
        $region139: #{pubmedbert_classifier_forward.1} parent=123 // pred_region
          %2378 = dma.done [#allocation5], 32
        $region140: #{pubmedbert_classifier_forward.1} parent=123 // pred_fallthru
          _
      $region124: #{pubmedbert_classifier_forward.1} parent=5 // pred_fallthru
        _
      %p2379 = scmp.le.s32.totalorder 2, %s33
      // Predicated region
      $region141: #{pubmedbert_classifier_forward.1} parent=5 // pred_check
        %p2380 = pneg %p2379
      $region142: #{pubmedbert_classifier_forward.1} parent=5 // pred_check_branch
        %2382 = sbr.rel (%p2380) target = $region144
      $region143: #{pubmedbert_classifier_forward.1} parent=5 // pred_region
        %s2383 = ssub.s32 %s33, 2
      $region144: #{pubmedbert_classifier_forward.1} parent=5 // pred_fallthru
        _
    $region6: #{pubmedbert_classifier_forward.1} parent=1 // loop_footer
      %s37 = sadd.s32 1, %s33
    $region7: #{pubmedbert_classifier_forward.1} parent=1 // loop_footer_branch
      %32 = sbr.rel target = $region3
    $region8: #{pubmedbert_classifier_forward.1} parent=1 // loop_exit
      _
    %2384 = vsyncpa [#allocation5], 1
    %s2385 = scalar_lea.sflag [#allocation5], 1
    %2386 = vsyncpa %s2385, 1

</llo_original>
